<compile_context>
chip_gen: v5e
topology: v5e:2x2
jax: 0.10.0
libtpu: 0.0.40
codegen_flags: <defaults>
</compile_context>

<pallas_src>
import functools
import math

import jax
import jax.numpy as jnp
from jax.experimental import pallas as pl
from jax.experimental.pallas import tpu as pltpu


# --------------------------------------------------------------------------
# Generation-aware configuration (VMEM budget / M-tile target)
# --------------------------------------------------------------------------

def _tpu_config():
    vmem_cap = 128 * 1024 * 1024
    try:
        info = pltpu.get_tpu_info()
        vmem_cap = int(getattr(info, "vmem_capacity_bytes", vmem_cap))
    except Exception:
        pass
    if vmem_cap <= 64 * 1024 * 1024:
        # v7x: 64 MiB physical VMEM per TC -> leave headroom for compiler scratch.
        return {"vmem_limit": 48 * 1024 * 1024, "tm": 256}
    # v5e / v6e: 128 MiB physical VMEM -> larger blocks, deeper DMA overlap.
    return {"vmem_limit": 64 * 1024 * 1024, "tm": 512}


_CFG = _tpu_config()
_VMEM_LIMIT = _CFG["vmem_limit"]
_TM_TARGET = _CFG["tm"]


def _pick_tile(dim, target, align):
    """Largest divisor of `dim` <= target that is a multiple of `align`
    (falls back to 128-/8-aligned divisors, then to the full dim)."""
    if dim <= target:
        return dim
    for a in (align, 128, 8):
        if a > target:
            continue
        t = (target // a) * a
        while t >= a:
            if dim % t == 0:
                return t
            t -= a
    # NOTE: falls back to the full dim for awkward sizes; fine for BERT shapes.
    return dim


def _gelu(y):
    # TODO(synk): HuggingFace BERT's default GELU is erf-based; tanh approximation used here.
    c = math.sqrt(2.0 / math.pi)
    return 0.5 * y * (1.0 + jnp.tanh(c * (y + 0.044715 * y * y * y)))


def _to_bf16(x):
    return x if x.dtype == jnp.bfloat16 else x.astype(jnp.bfloat16)


# --------------------------------------------------------------------------
# Linear layers (bias + optional activation).  Single-K-pass path (no
# reduction axis, no scratch) when the weight tile fits VMEM; tiled-K fallback.
# --------------------------------------------------------------------------

def _matmul_single_k_kernel(x_ref, w_ref, b_ref, o_ref, *, activation):
    y = jnp.dot(_to_bf16(x_ref[...]), w_ref[...],
                preferred_element_type=jnp.float32) + b_ref[...]
    if activation == "gelu":
        y = _gelu(y)
    elif activation == "tanh":
        y = jnp.tanh(y)
    o_ref[...] = y.astype(o_ref.dtype)


def _matmul_tiled_k_kernel(x_ref, w_ref, b_ref, o_ref, acc_ref, *, activation):
    @pl.when(pl.program_id(2) == 0)
    def _():
        acc_ref[...] = jnp.zeros_like(acc_ref)

    acc_ref[...] += jnp.dot(_to_bf16(x_ref[...]), w_ref[...],
                            preferred_element_type=jnp.float32)

    @pl.when(pl.program_id(2) == pl.num_programs(2) - 1)
    def _():
        y = acc_ref[...] + b_ref[...]
        if activation == "gelu":
            y = _gelu(y)
        elif activation == "tanh":
            y = jnp.tanh(y)
        o_ref[...] = y.astype(o_ref.dtype)


def pallas_matmul(x, w, b, activation="none", out_dtype=jnp.float32):
    # x:(M,K), w:(K,N) bf16 (nn.Linear weight pre-transposed), b:(1,N) f32
    M, K = x.shape
    N = w.shape[1]
    tm = _pick_tile(M, _TM_TARGET, 8)
    tn = _pick_tile(N, 768, 256)                 # 256-aligned for 2x256^2 MXU
    if K * tn * w.dtype.itemsize <= 8 * 1024 * 1024:
        return pl.pallas_call(
            functools.partial(_matmul_single_k_kernel, activation=activation),
            out_shape=jax.ShapeDtypeStruct((M, N), out_dtype),
            grid=(M // tm, N // tn),
            in_specs=[
                pl.BlockSpec((tm, K), lambda i, j: (i, 0)),
                pl.BlockSpec((K, tn), lambda i, j: (0, j)),
                pl.BlockSpec((1, tn), lambda i, j: (0, j)),
            ],
            out_specs=pl.BlockSpec((tm, tn), lambda i, j: (i, j)),
            compiler_params=pltpu.CompilerParams(
                dimension_semantics=("parallel", "parallel"),
                vmem_limit_bytes=_VMEM_LIMIT),
        )(x, w, b)
    tk = _pick_tile(K, 512, 256)
    return pl.pallas_call(
        functools.partial(_matmul_tiled_k_kernel, activation=activation),
        out_shape=jax.ShapeDtypeStruct((M, N), out_dtype),
        grid=(M // tm, N // tn, K // tk),
        in_specs=[
            pl.BlockSpec((tm, tk), lambda i, j, k: (i, k)),
            pl.BlockSpec((tk, tn), lambda i, j, k: (k, j)),
            pl.BlockSpec((1, tn), lambda i, j, k: (0, j)),
        ],
        out_specs=pl.BlockSpec((tm, tn), lambda i, j, k: (i, j)),
        scratch_shapes=[pltpu.VMEM((tm, tn), jnp.float32)],
        compiler_params=pltpu.CompilerParams(
            dimension_semantics=("parallel", "parallel", "arbitrary"),
            vmem_limit_bytes=_VMEM_LIMIT),
    )(x, w, b)


# --------------------------------------------------------------------------
# Attention output projection fused with bias + residual-add + LayerNorm.
# K = N = hidden, so the whole weight stays resident: no reduction axis.
# --------------------------------------------------------------------------

def _matmul_res_ln_kernel(x_ref, w_ref, b_ref, res_ref, g_ref, be_ref,
                          o_ref, *, eps):
    y = (jnp.dot(_to_bf16(x_ref[...]), w_ref[...],
                 preferred_element_type=jnp.float32)
         + b_ref[...] + res_ref[...])
    mu = jnp.mean(y, axis=-1, keepdims=True)
    var = jnp.mean((y - mu) ** 2, axis=-1, keepdims=True)
    o_ref[...] = (y - mu) * jax.lax.rsqrt(var + eps) * g_ref[...] + be_ref[...]


def pallas_matmul_res_ln(x, w, b, residual, gamma, beta, eps=1e-12):
    M, K = x.shape
    N = w.shape[1]
    tm = _pick_tile(M, _TM_TARGET, 8)
    return pl.pallas_call(
        functools.partial(_matmul_res_ln_kernel, eps=eps),
        out_shape=jax.ShapeDtypeStruct((M, N), jnp.float32),
        grid=(M // tm,),
        in_specs=[
            pl.BlockSpec((tm, K), lambda i: (i, 0)),
            pl.BlockSpec((K, N), lambda i: (0, 0)),
            pl.BlockSpec((1, N), lambda i: (0, 0)),
            pl.BlockSpec((tm, N), lambda i: (i, 0)),
            pl.BlockSpec((1, N), lambda i: (0, 0)),
            pl.BlockSpec((1, N), lambda i: (0, 0)),
        ],
        out_specs=pl.BlockSpec((tm, N), lambda i: (i, 0)),
        compiler_params=pltpu.CompilerParams(
            dimension_semantics=("parallel",),
            vmem_limit_bytes=_VMEM_LIMIT),
    )(x, w, b, residual, gamma, beta)


# --------------------------------------------------------------------------
# Fused FFN: (x @ Wi + bi) -> GELU -> (@ Wf + bf) + residual -> LayerNorm
# Tiles the intermediate dim; GELU activation never leaves VMEM; accumulates
# directly into the VMEM-resident f32 output block (no scratch).
# --------------------------------------------------------------------------

def _ffn_kernel(x_ref, wi_ref, bi_ref, wf_ref, bf_ref, res_ref, g_ref, be_ref,
                o_ref, *, eps):
    j = pl.program_id(1)

    @pl.when(j == 0)
    def _():
        o_ref[...] = jnp.zeros_like(o_ref)

    h = (jnp.dot(_to_bf16(x_ref[...]), wi_ref[...],
                 preferred_element_type=jnp.float32) + bi_ref[...])
    h = _gelu(h)
    o_ref[...] += jnp.dot(h.astype(jnp.bfloat16), wf_ref[...],
                          preferred_element_type=jnp.float32)

    @pl.when(j == pl.num_programs(1) - 1)
    def _():
        y = o_ref[...] + bf_ref[...] + res_ref[...]
        mu = jnp.mean(y, axis=-1, keepdims=True)
        var = jnp.mean((y - mu) ** 2, axis=-1, keepdims=True)
        o_ref[...] = (y - mu) * jax.lax.rsqrt(var + eps) * g_ref[...] + be_ref[...]


def pallas_ffn(x, wi, bi, wf, bf, residual, gamma, beta, eps=1e-12):
    M, H = x.shape
    I = wi.shape[1]
    tm = _pick_tile(M, _TM_TARGET, 8)
    ti = _pick_tile(I, 512, 256)
    return pl.pallas_call(
        functools.partial(_ffn_kernel, eps=eps),
        out_shape=jax.ShapeDtypeStruct((M, H), jnp.float32),
        grid=(M // tm, I // ti),
        in_specs=[
            pl.BlockSpec((tm, H), lambda i, j: (i, 0)),
            pl.BlockSpec((H, ti), lambda i, j: (0, j)),
            pl.BlockSpec((1, ti), lambda i, j: (0, j)),
            pl.BlockSpec((ti, H), lambda i, j: (j, 0)),
            pl.BlockSpec((1, H), lambda i, j: (0, 0)),
            pl.BlockSpec((tm, H), lambda i, j: (i, 0)),
            pl.BlockSpec((1, H), lambda i, j: (0, 0)),
            pl.BlockSpec((1, H), lambda i, j: (0, 0)),
        ],
        out_specs=pl.BlockSpec((tm, H), lambda i, j: (i, 0)),
        compiler_params=pltpu.CompilerParams(
            dimension_semantics=("parallel", "arbitrary"),
            vmem_limit_bytes=_VMEM_LIMIT),
    )(x, wi, bi, wf, bf, residual, gamma, beta)


# --------------------------------------------------------------------------
# Standalone LayerNorm (only after the embedding sum), tiled over rows
# --------------------------------------------------------------------------

def _layernorm_kernel(x_ref, g_ref, b_ref, o_ref, *, eps):
    x = x_ref[...]
    mu = jnp.mean(x, axis=-1, keepdims=True)
    var = jnp.mean((x - mu) ** 2, axis=-1, keepdims=True)
    o_ref[...] = (x - mu) * jax.lax.rsqrt(var + eps) * g_ref[...] + b_ref[...]


def pallas_layernorm(x, gamma, beta, eps=1e-12):
    M, H = x.shape
    tm = _pick_tile(M, _TM_TARGET, 8)
    return pl.pallas_call(
        functools.partial(_layernorm_kernel, eps=eps),
        out_shape=jax.ShapeDtypeStruct((M, H), jnp.float32),
        grid=(M // tm,),
        in_specs=[
            pl.BlockSpec((tm, H), lambda i: (i, 0)),
            pl.BlockSpec((1, H), lambda i: (0, 0)),
            pl.BlockSpec((1, H), lambda i: (0, 0)),
        ],
        out_specs=pl.BlockSpec((tm, H), lambda i: (i, 0)),
        compiler_params=pltpu.CompilerParams(
            dimension_semantics=("parallel",),
            vmem_limit_bytes=_VMEM_LIMIT),
    )(x, gamma, beta)


# --------------------------------------------------------------------------
# Self-attention: consumes the fused (B, S, 3H) bf16 QKV slab directly, slices
# heads in-kernel (no XLA transposes), emits a lane-dense (B, S, H) bf16
# context.  One batch item per grid step; heads are a static unroll so only a
# single (S, S) score matrix is live at a time.
# --------------------------------------------------------------------------

def _attention_kernel(qkv_ref, m_ref, o_ref, *, nh, hd, scale):
    qkv = qkv_ref[0]                  # (S, 3H) bf16, columns [Q | K | V], head-major
    add_mask = m_ref[0]               # (1, S) additive mask (0 or -1e9), f32
    H = nh * hd
    outs = []
    for h in range(nh):               # static unroll over heads
        # scale folded into Q (hd-wide) instead of the (S, S) score matrix
        q = qkv[:, h * hd:(h + 1) * hd] * scale
        k = qkv[:, H + h * hd:H + (h + 1) * hd]
        v = qkv[:, 2 * H + h * hd:2 * H + (h + 1) * hd]
        # NOTE: contraction dim hd (<128/256) under-fills the MXU; accepted —
        # the projection / FFN matmuls dominate FLOPs.
        s = jax.lax.dot_general(q, k, (((1,), (1,)), ((), ())),
                                preferred_element_type=jnp.float32)      # (S, S)
        s = s + add_mask
        s = s - jnp.max(s, axis=-1, keepdims=True)
        p = jnp.exp(s)
        p = p * pl.reciprocal(jnp.sum(p, axis=-1, keepdims=True), approx=True)
        outs.append(jnp.dot(p.astype(jnp.bfloat16), v,
                            preferred_element_type=jnp.float32))         # (S, hd)
    # Lane-dense (S, H) store: HBM writeback uses full-width vst, not vst.msk.
    o_ref[0] = jnp.concatenate(outs, axis=-1).astype(o_ref.dtype)


def pallas_attention(qkv, add_mask, nh, hd, scale):
    # qkv: (B, S, 3H) bf16 straight from the QKV matmul; add_mask: (B, 1, S) f32
    B, S, threeH = qkv.shape
    H = nh * hd
    return pl.pallas_call(
        functools.partial(_attention_kernel, nh=nh, hd=hd, scale=scale),
        out_shape=jax.ShapeDtypeStruct((B, S, H), jnp.bfloat16),
        grid=(B,),
        in_specs=[
            pl.BlockSpec((1, S, threeH), lambda b: (b, 0, 0)),
            pl.BlockSpec((1, 1, S), lambda b: (b, 0, 0)),
        ],
        out_specs=pl.BlockSpec((1, S, H), lambda b: (b, 0, 0)),
        compiler_params=pltpu.CompilerParams(
            dimension_semantics=("parallel",),
            vmem_limit_bytes=_VMEM_LIMIT),
    )(qkv, add_mask)


# --------------------------------------------------------------------------
# Fused SPV/MIP/classifier + LogSoftmax head (tiny tail: B x H inputs, C classes)
# --------------------------------------------------------------------------

def _head_kernel(sp_ref, wr_ref, tp_ref,
                 wspv_a_ref, wspv_b_ref, bspv_ref,
                 wmip_a_ref, wmip_b_ref, bmip_ref,
                 wcls_a_ref, wcls_b_ref, bcls_ref,
                 o_ref):
    sp = sp_ref[...]   # sentence pooler output            (B, H)
    wr = wr_ref[...]   # word representation from sentence (B, H)
    tp = tp_ref[...]   # target-word pooler output         (B, H)
    # SPV_layer(cat([sentence_output, word_repr], dim=1))
    spv = (jnp.dot(sp, wspv_a_ref[...], preferred_element_type=jnp.float32)
           + jnp.dot(wr, wspv_b_ref[...], preferred_element_type=jnp.float32)
           + bspv_ref[...])
    # MIP_layer(cat([target_word_repr, word_repr], dim=1))
    mip = (jnp.dot(tp, wmip_a_ref[...], preferred_element_type=jnp.float32)
           + jnp.dot(wr, wmip_b_ref[...], preferred_element_type=jnp.float32)
           + bmip_ref[...])
    # classifier(cat([SPV_hidden, MIP_hidden], dim=1))
    logits = (jnp.dot(spv, wcls_a_ref[...], preferred_element_type=jnp.float32)
              + jnp.dot(mip, wcls_b_ref[...], preferred_element_type=jnp.float32)
              + bcls_ref[...])
    # LogSoftmax(dim=1)
    m = jnp.max(logits, axis=-1, keepdims=True)
    z = logits - m
    lse = jnp.log(jnp.sum(jnp.exp(z), axis=-1, keepdims=True))
    o_ref[...] = z - lse


def pallas_head(sent_pool, word_rep, tgt_pool, head):
    B, H = sent_pool.shape
    C = head["b_cls"].shape[1]
    # cat along dim=1 expressed as split-weight matmuls: cat([a,b]) @ W == a@W[:H] + b@W[H:]
    wspv_a, wspv_b = head["w_spv"][:H], head["w_spv"][H:]
    wmip_a, wmip_b = head["w_mip"][:H], head["w_mip"][H:]
    wcls_a, wcls_b = head["w_cls"][:H], head["w_cls"][H:]
    # NOTE: C (=num_classes) is narrow; output is not lane-dense, but this is a
    # (B, C) tail that is negligible next to the encoder.

    def spec(shape):
        return pl.BlockSpec(shape, lambda i: (0, 0))

    return pl.pallas_call(
        _head_kernel,
        out_shape=jax.ShapeDtypeStruct((B, C), jnp.float32),
        grid=(1,),
        in_specs=[
            spec((B, H)), spec((B, H)), spec((B, H)),
            spec((H, H)), spec((H, H)), spec((1, H)),
            spec((H, H)), spec((H, H)), spec((1, H)),
            spec((H, C)), spec((H, C)), spec((1, C)),
        ],
        out_specs=spec((B, C)),
        compiler_params=pltpu.CompilerParams(vmem_limit_bytes=_VMEM_LIMIT),
    )(sent_pool, word_rep, tgt_pool,
      wspv_a, wspv_b, head["b_spv"],
      wmip_a, wmip_b, head["b_mip"],
      wcls_a, wcls_b, head["b_cls"])


# --------------------------------------------------------------------------
# Tiny synthetic BERT encoder built on the Pallas kernels
# --------------------------------------------------------------------------

def bert_encode(bp, input_ids, attention_mask, cfg):
    B, S = input_ids.shape
    H, nh = cfg["hidden"], cfg["heads"]
    hd = H // nh
    M = B * S

    # embeddings (lookup is glue), then Pallas layernorm
    emb = (jnp.take(bp["word_emb"], input_ids, axis=0)
           + bp["pos_emb"][None, :S, :]
           + bp["type_emb"][0][None, None, :])
    x2 = pallas_layernorm(emb.reshape(M, H), bp["emb_ln_g"], bp["emb_ln_b"])

    add_mask = ((1.0 - attention_mask.astype(jnp.float32)) * -1e9).reshape(B, 1, S)
    scale = 1.0 / math.sqrt(hd)

    for layer in bp["layers"]:
        # fused QKV projection: one (H, 3H) matmul; output carried in bf16 so
        # the largest per-layer intermediate costs half the HBM traffic
        qkv = pallas_matmul(x2, layer["w_qkv"], layer["b_qkv"],
                            out_dtype=jnp.bfloat16).reshape(B, S, 3 * H)
        # attention consumes the QKV slab directly (head slicing inside the
        # kernel; no XLA 5-D transposes) and emits lane-dense (B, S, H) bf16
        ctx = pallas_attention(qkv, add_mask, nh, hd, scale).reshape(M, H)
        # output projection + bias + residual + LayerNorm, fused
        x2 = pallas_matmul_res_ln(ctx, layer["wo"], layer["bo"],
                                  x2, layer["ln1_g"], layer["ln1_b"])
        # fused FFN (GELU activation stays in VMEM) + residual + LayerNorm
        x2 = pallas_ffn(x2, layer["wi"], layer["bi"], layer["wf"], layer["bf"],
                        x2, layer["ln2_g"], layer["ln2_b"])

    x = x2.reshape(B, S, H)
    cls = x[:, 0, :]
    pooled = pallas_matmul(cls, bp["pooler_w"], bp["pooler_b"], activation="tanh")
    return x, pooled


def melbert_forward(params, input_ids, attention_mask,
                    input_ids_2, attention_mask_2, target_idx, cfg):
    hs1, sentence_output = bert_encode(params["bert"], input_ids, attention_mask, cfg)
    # mirrors `sentence_hidden_states[0][target_idx]`: gather positions from batch item 0
    word_rep = jnp.take(hs1[0], target_idx, axis=0)                      # (B, H)
    _, target_word_rep = bert_encode(params["bert"], input_ids_2, attention_mask_2, cfg)
    # nn.Dropout -> identity at inference
    return pallas_head(sentence_output, word_rep, target_word_rep, params["head"])


# --------------------------------------------------------------------------
# Deterministic parameter initialization (matmul weights stored in bf16)
# --------------------------------------------------------------------------

def init_params(key, cfg):
    H, I = cfg["hidden"], cfg["intermediate"]
    V, P, C = cfg["vocab"], cfg["max_pos"], cfg["num_classes"]

    def dense(k, n_in, n_out, dtype=jnp.bfloat16):
        # stored as (in, out), i.e. torch nn.Linear weight transposed
        w = (jax.random.normal(k, (n_in, n_out), jnp.float32) * 0.02).astype(dtype)
        b = jnp.zeros((1, n_out), jnp.float32)
        return w, b

    keys = iter(jax.random.split(key, 64))
    bert = {
        "word_emb": jax.random.normal(next(keys), (V, H), jnp.float32) * 0.02,
        "pos_emb": jax.random.normal(next(keys), (P, H), jnp.float32) * 0.02,
        "type_emb": jax.random.normal(next(keys), (2, H), jnp.float32) * 0.02,
        "emb_ln_g": jnp.ones((1, H), jnp.float32),
        "emb_ln_b": jnp.zeros((1, H), jnp.float32),
        "layers": [],
    }
    for _ in range(cfg["layers"]):
        # fused Q|K|V: columns [Q(nh*hd) | K(nh*hd) | V(nh*hd)], each head-major
        w_qkv, b_qkv = dense(next(keys), H, 3 * H)
        wo, bo = dense(next(keys), H, H)
        wi, bi = dense(next(keys), H, I)
        wf, bf = dense(next(keys), I, H)
        bert["layers"].append({
            "w_qkv": w_qkv, "b_qkv": b_qkv,
            "wo": wo, "bo": bo,
            "ln1_g": jnp.ones((1, H), jnp.float32), "ln1_b": jnp.zeros((1, H), jnp.float32),
            "wi": wi, "bi": bi, "wf": wf, "bf": bf,
            "ln2_g": jnp.ones((1, H), jnp.float32), "ln2_b": jnp.zeros((1, H), jnp.float32),
        })
    bert["pooler_w"], bert["pooler_b"] = dense(next(keys), H, H)

    w_spv, b_spv = dense(next(keys), 2 * H, H, dtype=jnp.float32)
    w_mip, b_mip = dense(next(keys), 2 * H, H, dtype=jnp.float32)
    w_cls, b_cls = dense(next(keys), 2 * H, C, dtype=jnp.float32)
    # TODO(synk): real model also has the unused `self.linear(H -> C)`; it never
    # participates in forward(), so it is omitted here.
    head = {"w_spv": w_spv, "b_spv": b_spv,
            "w_mip": w_mip, "b_mip": b_mip,
            "w_cls": w_cls, "b_cls": b_cls}
    return {"bert": bert, "head": head}


# --------------------------------------------------------------------------
# Main
# --------------------------------------------------------------------------

if __name__ == "__main__":
    cfg = dict(hidden=32, heads=2, layers=2, intermediate=64,
               vocab=50, max_pos=16, num_classes=3)
    B, S = 2, 8

    root = jax.random.PRNGKey(0)
    k_par, k_ids1, k_ids2 = jax.random.split(root, 3)

    params = init_params(k_par, cfg)

    input_ids = jax.random.randint(k_ids1, (B, S), 0, cfg["vocab"], dtype=jnp.int32)
    attention_mask = jnp.ones((B, S), jnp.int32)
    input_ids_2 = jax.random.randint(k_ids2, (B, S), 0, cfg["vocab"], dtype=jnp.int32)
    attention_mask_2 = jnp.ones((B, S), jnp.int32)
    target_idx = jnp.array([3, 5], dtype=jnp.int32)     # per-example target positions

    fwd = jax.jit(functools.partial(melbert_forward, cfg=cfg))
    log_probs = fwd(params, input_ids, attention_mask,
                    input_ids_2, attention_mask_2, target_idx)
    jax.block_until_ready(log_probs)

    assert log_probs.shape == (B, cfg["num_classes"])
    assert bool(jnp.all(jnp.isfinite(log_probs)))
    # rows of log-softmax must exp-sum to 1
    assert bool(jnp.allclose(jnp.sum(jnp.exp(log_probs), axis=1), 1.0, atol=1e-5))
    print("KERNEL_OK")
</pallas_src>

<mosaic_0001>
module attributes {stable_mosaic.version = 11 : i64} {
  func.func @_layernorm_kernel(%arg0: i32, %arg1: memref<16x32xf32, #tpu.memory_space<vmem>>, %arg2: memref<1x32xf32, #tpu.memory_space<vmem>>, %arg3: memref<1x32xf32, #tpu.memory_space<vmem>>, %arg4: memref<16x32xf32, #tpu.memory_space<vmem>>) attributes {dimension_semantics = [#tpu.dimension_semantics<parallel>], iteration_bounds = array<i64: 1>, scalar_prefetch = 0 : i64, scratch_operands = 0 : i64, tpu.core_type = #tpu.core_type<tc>, window_params = [{transform_indices = @transform_0, window_bounds = array<i64: 16, 32>}, {pipeline_mode = #tpu.pipeline_mode<synchronous>, transform_indices = @transform_1, window_bounds = array<i64: 1, 32>}, {pipeline_mode = #tpu.pipeline_mode<synchronous>, transform_indices = @transform_2, window_bounds = array<i64: 1, 32>}, {transform_indices = @transform_3, window_bounds = array<i64: 16, 32>}]} {
    %c0 = arith.constant 0 : index
    %c0_0 = arith.constant 0 : index
    %0 = vector.load %arg1[%c0, %c0_0] : memref<16x32xf32, #tpu.memory_space<vmem>>, vector<16x32xf32>
    %cst = arith.constant dense<0.000000e+00> : vector<16xf32>
    %1 = vector.multi_reduction <add>, %0, %cst [1] : vector<16x32xf32> to vector<16xf32>
    %2 = vector.shape_cast %1 : vector<16xf32> to vector<16x1xf32>
    %cst_1 = arith.constant 3.200000e+01 : f32
    %3 = vector.broadcast %cst_1 : f32 to vector<16x1xf32>
    %4 = arith.divf %2, %3 : vector<16x1xf32>
    %5 = vector.broadcast %4 : vector<16x1xf32> to vector<16x32xf32>
    %6 = arith.subf %0, %5 : vector<16x32xf32>
    %7 = arith.mulf %6, %6 : vector<16x32xf32>
    %cst_2 = arith.constant dense<0.000000e+00> : vector<16xf32>
    %8 = vector.multi_reduction <add>, %7, %cst_2 [1] : vector<16x32xf32> to vector<16xf32>
    %9 = vector.shape_cast %8 : vector<16xf32> to vector<16x1xf32>
    %cst_3 = arith.constant 3.200000e+01 : f32
    %10 = vector.broadcast %cst_3 : f32 to vector<16x1xf32>
    %11 = arith.divf %9, %10 : vector<16x1xf32>
    %12 = vector.broadcast %4 : vector<16x1xf32> to vector<16x32xf32>
    %13 = arith.subf %0, %12 : vector<16x32xf32>
    %cst_4 = arith.constant 9.99999996E-13 : f32
    %14 = vector.broadcast %cst_4 : f32 to vector<16x1xf32>
    %15 = arith.addf %11, %14 : vector<16x1xf32>
    %16 = math.rsqrt %15 : vector<16x1xf32>
    %17 = vector.broadcast %16 : vector<16x1xf32> to vector<16x32xf32>
    %18 = arith.mulf %13, %17 : vector<16x32xf32>
    %c0_5 = arith.constant 0 : index
    %c0_6 = arith.constant 0 : index
    %19 = vector.load %arg2[%c0_5, %c0_6] : memref<1x32xf32, #tpu.memory_space<vmem>>, vector<1x32xf32>
    %20 = vector.broadcast %19 : vector<1x32xf32> to vector<16x32xf32>
    %21 = arith.mulf %18, %20 : vector<16x32xf32>
    %c0_7 = arith.constant 0 : index
    %c0_8 = arith.constant 0 : index
    %22 = vector.load %arg3[%c0_7, %c0_8] : memref<1x32xf32, #tpu.memory_space<vmem>>, vector<1x32xf32>
    %23 = vector.broadcast %22 : vector<1x32xf32> to vector<16x32xf32>
    %24 = arith.addf %21, %23 : vector<16x32xf32>
    %c0_9 = arith.constant 0 : index
    %c0_10 = arith.constant 0 : index
    %25 = vector.load %arg4[%c0_9, %c0_10] : memref<16x32xf32, #tpu.memory_space<vmem>>, vector<16x32xf32>
    tpu.vector_store %arg4[%c0_9, %c0_10], %24 {strides = array<i32>} : memref<16x32xf32, #tpu.memory_space<vmem>>, vector<16x32xf32>,
    return
  }
  func.func @transform_0(%arg0: i32) -> (i32, i32) {
    %c0_i32 = arith.constant 0 : i32
    %c0_i32_0 = arith.constant 0 : i32
    return %arg0, %c0_i32 : i32, i32
  }
  func.func @transform_1(%arg0: i32) -> (i32, i32) {
    %c0_i32 = arith.constant 0 : i32
    %c0_i32_0 = arith.constant 0 : i32
    %c0_i32_1 = arith.constant 0 : i32
    return %c0_i32, %c0_i32_0 : i32, i32
  }
  func.func @transform_2(%arg0: i32) -> (i32, i32) {
    %c0_i32 = arith.constant 0 : i32
    %c0_i32_0 = arith.constant 0 : i32
    %c0_i32_1 = arith.constant 0 : i32
    return %c0_i32, %c0_i32_0 : i32, i32
  }
  func.func @transform_3(%arg0: i32) -> (i32, i32) {
    %c0_i32 = arith.constant 0 : i32
    %c0_i32_0 = arith.constant 0 : i32
    return %arg0, %c0_i32 : i32, i32
  }
}

module attributes {stable_mosaic.version = 11 : i64} {
  func.func @_matmul_single_k_kernel(%arg0: i32, %arg1: i32, %arg2: memref<16x32xf32, #tpu.memory_space<vmem>>, %arg3: memref<32x96xbf16, #tpu.memory_space<vmem>>, %arg4: memref<1x96xf32, #tpu.memory_space<vmem>>, %arg5: memref<16x96xbf16, #tpu.memory_space<vmem>>) attributes {dimension_semantics = [#tpu.dimension_semantics<parallel>, #tpu.dimension_semantics<parallel>], iteration_bounds = array<i64: 1, 1>, scalar_prefetch = 0 : i64, scratch_operands = 0 : i64, tpu.core_type = #tpu.core_type<tc>, window_params = [{transform_indices = @transform_0, window_bounds = array<i64: 16, 32>}, {transform_indices = @transform_1, window_bounds = array<i64: 32, 96>}, {transform_indices = @transform_2, window_bounds = array<i64: 1, 96>}, {transform_indices = @transform_3, window_bounds = array<i64: 16, 96>}]} {
    %c0 = arith.constant 0 : index
    %c0_0 = arith.constant 0 : index
    %0 = vector.load %arg2[%c0, %c0_0] : memref<16x32xf32, #tpu.memory_space<vmem>>, vector<16x32xf32>
    %1 = arith.truncf %0 : vector<16x32xf32> to vector<16x32xbf16>
    %c0_1 = arith.constant 0 : index
    %c0_2 = arith.constant 0 : index
    %2 = vector.load %arg3[%c0_1, %c0_2] : memref<32x96xbf16, #tpu.memory_space<vmem>>, vector<32x96xbf16>
    %cst = arith.constant dense<0.000000e+00> : vector<16x96xf32>
    %3 = tpu.matmul %1, %2, %cst {dimension_numbers = #tpu.dot_dimension_numbers<[1], [0], [0], [1], [0, 0, 1, 1], [], []>} : vector<16x32xbf16>, vector<32x96xbf16>, vector<16x96xf32> -> vector<16x96xf32>
    %c0_3 = arith.constant 0 : index
    %c0_4 = arith.constant 0 : index
    %4 = vector.load %arg4[%c0_3, %c0_4] : memref<1x96xf32, #tpu.memory_space<vmem>>, vector<1x96xf32>
    %5 = vector.broadcast %4 : vector<1x96xf32> to vector<16x96xf32>
    %6 = arith.addf %3, %5 : vector<16x96xf32>
    %7 = arith.truncf %6 : vector<16x96xf32> to vector<16x96xbf16>
    %c0_5 = arith.constant 0 : index
    %c0_6 = arith.constant 0 : index
    %8 = vector.load %arg5[%c0_5, %c0_6] : memref<16x96xbf16, #tpu.memory_space<vmem>>, vector<16x96xbf16>
    tpu.vector_store %arg5[%c0_5, %c0_6], %7 {strides = array<i32>} : memref<16x96xbf16, #tpu.memory_space<vmem>>, vector<16x96xbf16>,
    return
  }
  func.func @transform_0(%arg0: i32, %arg1: i32) -> (i32, i32) {
    %c0_i32 = arith.constant 0 : i32
    %c0_i32_0 = arith.constant 0 : i32
    return %arg0, %c0_i32 : i32, i32
  }
  func.func @transform_1(%arg0: i32, %arg1: i32) -> (i32, i32) {
    %c0_i32 = arith.constant 0 : i32
    %c0_i32_0 = arith.constant 0 : i32
    return %c0_i32, %arg1 : i32, i32
  }
  func.func @transform_2(%arg0: i32, %arg1: i32) -> (i32, i32) {
    %c0_i32 = arith.constant 0 : i32
    %c0_i32_0 = arith.constant 0 : i32
    return %c0_i32, %arg1 : i32, i32
  }
  func.func @transform_3(%arg0: i32, %arg1: i32) -> (i32, i32) {
    %c0_i32 = arith.constant 0 : i32
    return %arg0, %arg1 : i32, i32
  }
}

module attributes {stable_mosaic.version = 11 : i64} {
  func.func @_matmul_res_ln_kernel(%arg0: i32, %arg1: memref<16x32xbf16, #tpu.memory_space<vmem>>, %arg2: memref<32x32xbf16, #tpu.memory_space<vmem>>, %arg3: memref<1x32xf32, #tpu.memory_space<vmem>>, %arg4: memref<16x32xf32, #tpu.memory_space<vmem>>, %arg5: memref<1x32xf32, #tpu.memory_space<vmem>>, %arg6: memref<1x32xf32, #tpu.memory_space<vmem>>, %arg7: memref<16x32xf32, #tpu.memory_space<vmem>>) attributes {dimension_semantics = [#tpu.dimension_semantics<parallel>], iteration_bounds = array<i64: 1>, scalar_prefetch = 0 : i64, scratch_operands = 0 : i64, tpu.core_type = #tpu.core_type<tc>, window_params = [{transform_indices = @transform_0, window_bounds = array<i64: 16, 32>}, {pipeline_mode = #tpu.pipeline_mode<synchronous>, transform_indices = @transform_1, window_bounds = array<i64: 32, 32>}, {pipeline_mode = #tpu.pipeline_mode<synchronous>, transform_indices = @transform_2, window_bounds = array<i64: 1, 32>}, {transform_indices = @transform_3, window_bounds = array<i64: 16, 32>}, {pipeline_mode = #tpu.pipeline_mode<synchronous>, transform_indices = @transform_4, window_bounds = array<i64: 1, 32>}, {pipeline_mode = #tpu.pipeline_mode<synchronous>, transform_indices = @transform_5, window_bounds = array<i64: 1, 32>}, {transform_indices = @transform_6, window_bounds = array<i64: 16, 32>}]} {
    %c0 = arith.constant 0 : index
    %c0_0 = arith.constant 0 : index
    %0 = vector.load %arg1[%c0, %c0_0] : memref<16x32xbf16, #tpu.memory_space<vmem>>, vector<16x32xbf16>
    %c0_1 = arith.constant 0 : index
    %c0_2 = arith.constant 0 : index
    %1 = vector.load %arg2[%c0_1, %c0_2] : memref<32x32xbf16, #tpu.memory_space<vmem>>, vector<32x32xbf16>
    %cst = arith.constant dense<0.000000e+00> : vector<16x32xf32>
    %2 = tpu.matmul %0, %1, %cst {dimension_numbers = #tpu.dot_dimension_numbers<[1], [0], [0], [1], [0, 0, 1, 1], [], []>} : vector<16x32xbf16>, vector<32x32xbf16>, vector<16x32xf32> -> vector<16x32xf32>
    %c0_3 = arith.constant 0 : index
    %c0_4 = arith.constant 0 : index
    %3 = vector.load %arg3[%c0_3, %c0_4] : memref<1x32xf32, #tpu.memory_space<vmem>>, vector<1x32xf32>
    %4 = vector.broadcast %3 : vector<1x32xf32> to vector<16x32xf32>
    %5 = arith.addf %2, %4 : vector<16x32xf32>
    %c0_5 = arith.constant 0 : index
    %c0_6 = arith.constant 0 : index
    %6 = vector.load %arg4[%c0_5, %c0_6] : memref<16x32xf32, #tpu.memory_space<vmem>>, vector<16x32xf32>
    %7 = arith.addf %5, %6 : vector<16x32xf32>
    %cst_7 = arith.constant dense<0.000000e+00> : vector<16xf32>
    %8 = vector.multi_reduction <add>, %7, %cst_7 [1] : vector<16x32xf32> to vector<16xf32>
    %9 = vector.shape_cast %8 : vector<16xf32> to vector<16x1xf32>
    %cst_8 = arith.constant 3.200000e+01 : f32
    %10 = vector.broadcast %cst_8 : f32 to vector<16x1xf32>
    %11 = arith.divf %9, %10 : vector<16x1xf32>
    %12 = vector.broadcast %11 : vector<16x1xf32> to vector<16x32xf32>
    %13 = arith.subf %7, %12 : vector<16x32xf32>
    %14 = arith.mulf %13, %13 : vector<16x32xf32>
    %cst_9 = arith.constant dense<0.000000e+00> : vector<16xf32>
    %15 = vector.multi_reduction <add>, %14, %cst_9 [1] : vector<16x32xf32> to vector<16xf32>
    %16 = vector.shape_cast %15 : vector<16xf32> to vector<16x1xf32>
    %cst_10 = arith.constant 3.200000e+01 : f32
    %17 = vector.broadcast %cst_10 : f32 to vector<16x1xf32>
    %18 = arith.divf %16, %17 : vector<16x1xf32>
    %19 = vector.broadcast %11 : vector<16x1xf32> to vector<16x32xf32>
    %20 = arith.subf %7, %19 : vector<16x32xf32>
    %cst_11 = arith.constant 9.99999996E-13 : f32
    %21 = vector.broadcast %cst_11 : f32 to vector<16x1xf32>
    %22 = arith.addf %18, %21 : vector<16x1xf32>
    %23 = math.rsqrt %22 : vector<16x1xf32>
    %24 = vector.broadcast %23 : vector<16x1xf32> to vector<16x32xf32>
    %25 = arith.mulf %20, %24 : vector<16x32xf32>
    %c0_12 = arith.constant 0 : index
    %c0_13 = arith.constant 0 : index
    %26 = vector.load %arg5[%c0_12, %c0_13] : memref<1x32xf32, #tpu.memory_space<vmem>>, vector<1x32xf32>
    %27 = vector.broadcast %26 : vector<1x32xf32> to vector<16x32xf32>
    %28 = arith.mulf %25, %27 : vector<16x32xf32>
    %c0_14 = arith.constant 0 : index
    %c0_15 = arith.constant 0 : index
    %29 = vector.load %arg6[%c0_14, %c0_15] : memref<1x32xf32, #tpu.memory_space<vmem>>, vector<1x32xf32>
    %30 = vector.broadcast %29 : vector<1x32xf32> to vector<16x32xf32>
    %31 = arith.addf %28, %30 : vector<16x32xf32>
    %c0_16 = arith.constant 0 : index
    %c0_17 = arith.constant 0 : index
    %32 = vector.load %arg7[%c0_16, %c0_17] : memref<16x32xf32, #tpu.memory_space<vmem>>, vector<16x32xf32>
    tpu.vector_store %arg7[%c0_16, %c0_17], %31 {strides = array<i32>} : memref<16x32xf32, #tpu.memory_space<vmem>>, vector<16x32xf32>,
    return
  }
  func.func @transform_0(%arg0: i32) -> (i32, i32) {
    %c0_i32 = arith.constant 0 : i32
    %c0_i32_0 = arith.constant 0 : i32
    return %arg0, %c0_i32 : i32, i32
  }
  func.func @transform_1(%arg0: i32) -> (i32, i32) {
    %c0_i32 = arith.constant 0 : i32
    %c0_i32_0 = arith.constant 0 : i32
    %c0_i32_1 = arith.constant 0 : i32
    return %c0_i32, %c0_i32_0 : i32, i32
  }
  func.func @transform_2(%arg0: i32) -> (i32, i32) {
    %c0_i32 = arith.constant 0 : i32
    %c0_i32_0 = arith.constant 0 : i32
    %c0_i32_1 = arith.constant 0 : i32
    return %c0_i32, %c0_i32_0 : i32, i32
  }
  func.func @transform_3(%arg0: i32) -> (i32, i32) {
    %c0_i32 = arith.constant 0 : i32
    %c0_i32_0 = arith.constant 0 : i32
    return %arg0, %c0_i32 : i32, i32
  }
  func.func @transform_4(%arg0: i32) -> (i32, i32) {
    %c0_i32 = arith.constant 0 : i32
    %c0_i32_0 = arith.constant 0 : i32
    %c0_i32_1 = arith.constant 0 : i32
    return %c0_i32, %c0_i32_0 : i32, i32
  }
  func.func @transform_5(%arg0: i32) -> (i32, i32) {
    %c0_i32 = arith.constant 0 : i32
    %c0_i32_0 = arith.constant 0 : i32
    %c0_i32_1 = arith.constant 0 : i32
    return %c0_i32, %c0_i32_0 : i32, i32
  }
  func.func @transform_6(%arg0: i32) -> (i32, i32) {
    %c0_i32 = arith.constant 0 : i32
    %c0_i32_0 = arith.constant 0 : i32
    return %arg0, %c0_i32 : i32, i32
  }
}

module attributes {stable_mosaic.version = 11 : i64} {
  func.func @_attention_kernel(%arg0: i32, %arg1: memref<1x8x96xbf16, #tpu.memory_space<vmem>>, %arg2: memref<1x1x8xf32, #tpu.memory_space<vmem>>, %arg3: memref<1x8x32xbf16, #tpu.memory_space<vmem>>) attributes {dimension_semantics = [#tpu.dimension_semantics<parallel>], iteration_bounds = array<i64: 2>, scalar_prefetch = 0 : i64, scratch_operands = 0 : i64, tpu.core_type = #tpu.core_type<tc>, window_params = [{transform_indices = @transform_0, window_bounds = array<i64: 1, 8, 96>}, {transform_indices = @transform_1, window_bounds = array<i64: 1, 1, 8>}, {transform_indices = @transform_2, window_bounds = array<i64: 1, 8, 32>}]} {
    %c0 = arith.constant 0 : index
    %c0_0 = arith.constant 0 : index
    %c0_1 = arith.constant 0 : index
    %0 = vector.load %arg1[%c0, %c0_0, %c0_1] : memref<1x8x96xbf16, #tpu.memory_space<vmem>>, vector<1x8x96xbf16>
    %1 = vector.shape_cast %0 : vector<1x8x96xbf16> to vector<8x96xbf16>
    %c0_2 = arith.constant 0 : index
    %c0_3 = arith.constant 0 : index
    %c0_4 = arith.constant 0 : index
    %2 = vector.load %arg2[%c0_2, %c0_3, %c0_4] : memref<1x1x8xf32, #tpu.memory_space<vmem>>, vector<1x1x8xf32>
    %3 = vector.shape_cast %2 : vector<1x1x8xf32> to vector<1x8xf32>
    %4 = vector.extract_strided_slice %1 {offsets = [0, 0], sizes = [8, 16], strides = [1, 1]} : vector<8x96xbf16> to vector<8x16xbf16>
    %cst = arith.constant 2.500000e-01 : bf16
    %5 = vector.broadcast %cst : bf16 to vector<8x16xbf16>
    %6 = arith.mulf %4, %5 : vector<8x16xbf16>
    %7 = vector.extract_strided_slice %1 {offsets = [0, 32], sizes = [8, 16], strides = [1, 1]} : vector<8x96xbf16> to vector<8x16xbf16>
    %8 = vector.extract_strided_slice %1 {offsets = [0, 64], sizes = [8, 16], strides = [1, 1]} : vector<8x96xbf16> to vector<8x16xbf16>
    %cst_5 = arith.constant dense<0.000000e+00> : vector<8x8xf32>
    %9 = tpu.matmul %6, %7, %cst_5 {dimension_numbers = #tpu.dot_dimension_numbers<[1], [1], [0], [0], [0, 0, 1, 0], [], []>} : vector<8x16xbf16>, vector<8x16xbf16>, vector<8x8xf32> -> vector<8x8xf32>
    %10 = vector.broadcast %3 : vector<1x8xf32> to vector<8x8xf32>
    %11 = arith.addf %9, %10 : vector<8x8xf32>
    %cst_6 = arith.constant dense<0xFF800000> : vector<8xf32>
    %12 = vector.multi_reduction <maximumf>, %11, %cst_6 [1] : vector<8x8xf32> to vector<8xf32>
    %13 = vector.shape_cast %12 : vector<8xf32> to vector<8x1xf32>
    %14 = vector.broadcast %13 : vector<8x1xf32> to vector<8x8xf32>
    %15 = arith.subf %11, %14 : vector<8x8xf32>
    %16 = math.exp %15 : vector<8x8xf32>
    %cst_7 = arith.constant dense<0.000000e+00> : vector<8xf32>
    %17 = vector.multi_reduction <add>, %16, %cst_7 [1] : vector<8x8xf32> to vector<8xf32>
    %18 = vector.shape_cast %17 : vector<8xf32> to vector<8x1xf32>
    %19 = tpu.reciprocal %18 {approx = true} : vector<8x1xf32> -> vector<8x1xf32>
    %20 = vector.broadcast %19 : vector<8x1xf32> to vector<8x8xf32>
    %21 = arith.mulf %16, %20 : vector<8x8xf32>
    %22 = arith.truncf %21 : vector<8x8xf32> to vector<8x8xbf16>
    %cst_8 = arith.constant dense<0.000000e+00> : vector<8x16xf32>
    %23 = tpu.matmul %22, %8, %cst_8 {dimension_numbers = #tpu.dot_dimension_numbers<[1], [0], [0], [1], [0, 0, 1, 1], [], []>} : vector<8x8xbf16>, vector<8x16xbf16>, vector<8x16xf32> -> vector<8x16xf32>
    %24 = vector.extract_strided_slice %1 {offsets = [0, 16], sizes = [8, 16], strides = [1, 1]} : vector<8x96xbf16> to vector<8x16xbf16>
    %cst_9 = arith.constant 2.500000e-01 : bf16
    %25 = vector.broadcast %cst_9 : bf16 to vector<8x16xbf16>
    %26 = arith.mulf %24, %25 : vector<8x16xbf16>
    %27 = vector.extract_strided_slice %1 {offsets = [0, 48], sizes = [8, 16], strides = [1, 1]} : vector<8x96xbf16> to vector<8x16xbf16>
    %28 = vector.extract_strided_slice %1 {offsets = [0, 80], sizes = [8, 16], strides = [1, 1]} : vector<8x96xbf16> to vector<8x16xbf16>
    %cst_10 = arith.constant dense<0.000000e+00> : vector<8x8xf32>
    %29 = tpu.matmul %26, %27, %cst_10 {dimension_numbers = #tpu.dot_dimension_numbers<[1], [1], [0], [0], [0, 0, 1, 0], [], []>} : vector<8x16xbf16>, vector<8x16xbf16>, vector<8x8xf32> -> vector<8x8xf32>
    %30 = vector.broadcast %3 : vector<1x8xf32> to vector<8x8xf32>
    %31 = arith.addf %29, %30 : vector<8x8xf32>
    %cst_11 = arith.constant dense<0xFF800000> : vector<8xf32>
    %32 = vector.multi_reduction <maximumf>, %31, %cst_11 [1] : vector<8x8xf32> to vector<8xf32>
    %33 = vector.shape_cast %32 : vector<8xf32> to vector<8x1xf32>
    %34 = vector.broadcast %33 : vector<8x1xf32> to vector<8x8xf32>
    %35 = arith.subf %31, %34 : vector<8x8xf32>
    %36 = math.exp %35 : vector<8x8xf32>
    %cst_12 = arith.constant dense<0.000000e+00> : vector<8xf32>
    %37 = vector.multi_reduction <add>, %36, %cst_12 [1] : vector<8x8xf32> to vector<8xf32>
    %38 = vector.shape_cast %37 : vector<8xf32> to vector<8x1xf32>
    %39 = tpu.reciprocal %38 {approx = true} : vector<8x1xf32> -> vector<8x1xf32>
    %40 = vector.broadcast %39 : vector<8x1xf32> to vector<8x8xf32>
    %41 = arith.mulf %36, %40 : vector<8x8xf32>
    %42 = arith.truncf %41 : vector<8x8xf32> to vector<8x8xbf16>
    %cst_13 = arith.constant dense<0.000000e+00> : vector<8x16xf32>
    %43 = tpu.matmul %42, %28, %cst_13 {dimension_numbers = #tpu.dot_dimension_numbers<[1], [0], [0], [1], [0, 0, 1, 1], [], []>} : vector<8x8xbf16>, vector<8x16xbf16>, vector<8x16xf32> -> vector<8x16xf32>
    %44 = tpu.concatenate %23, %43 in 1 : vector<8x16xf32>, vector<8x16xf32> -> vector<8x32xf32>
    %45 = arith.truncf %44 : vector<8x32xf32> to vector<8x32xbf16>
    %c0_14 = arith.constant 0 : index
    %c0_15 = arith.constant 0 : index
    %c0_16 = arith.constant 0 : index
    %46 = vector.load %arg3[%c0_14, %c0_15, %c0_16] : memref<1x8x32xbf16, #tpu.memory_space<vmem>>, vector<1x8x32xbf16>
    %47 = vector.shape_cast %46 : vector<1x8x32xbf16> to vector<8x32xbf16>
    %48 = vector.shape_cast %45 : vector<8x32xbf16> to vector<1x8x32xbf16>
    tpu.vector_store %arg3[%c0_14, %c0_15, %c0_16], %48 {strides = array<i32>} : memref<1x8x32xbf16, #tpu.memory_space<vmem>>, vector<1x8x32xbf16>,
    return
  }
  func.func @transform_0(%arg0: i32) -> (i32, i32, i32) {
    %c0_i32 = arith.constant 0 : i32
    %c0_i32_0 = arith.constant 0 : i32
    %c0_i32_1 = arith.constant 0 : i32
    return %arg0, %c0_i32, %c0_i32_0 : i32, i32, i32
  }
  func.func @transform_1(%arg0: i32) -> (i32, i32, i32) {
    %c0_i32 = arith.constant 0 : i32
    %c0_i32_0 = arith.constant 0 : i32
    %c0_i32_1 = arith.constant 0 : i32
    return %arg0, %c0_i32, %c0_i32_0 : i32, i32, i32
  }
  func.func @transform_2(%arg0: i32) -> (i32, i32, i32) {
    %c0_i32 = arith.constant 0 : i32
    %c0_i32_0 = arith.constant 0 : i32
    %c0_i32_1 = arith.constant 0 : i32
    return %arg0, %c0_i32, %c0_i32_0 : i32, i32, i32
  }
}

module attributes {stable_mosaic.version = 11 : i64} {
  func.func @_matmul_single_k_kernel(%arg0: i32, %arg1: i32, %arg2: memref<2x32xf32, #tpu.memory_space<vmem>>, %arg3: memref<32x32xbf16, #tpu.memory_space<vmem>>, %arg4: memref<1x32xf32, #tpu.memory_space<vmem>>, %arg5: memref<2x32xf32, #tpu.memory_space<vmem>>) attributes {dimension_semantics = [#tpu.dimension_semantics<parallel>, #tpu.dimension_semantics<parallel>], iteration_bounds = array<i64: 1, 1>, scalar_prefetch = 0 : i64, scratch_operands = 0 : i64, tpu.core_type = #tpu.core_type<tc>, window_params = [{transform_indices = @transform_0, window_bounds = array<i64: 2, 32>}, {transform_indices = @transform_1, window_bounds = array<i64: 32, 32>}, {transform_indices = @transform_2, window_bounds = array<i64: 1, 32>}, {transform_indices = @transform_3, window_bounds = array<i64: 2, 32>}]} {
    %c0 = arith.constant 0 : index
    %c0_0 = arith.constant 0 : index
    %0 = vector.load %arg2[%c0, %c0_0] : memref<2x32xf32, #tpu.memory_space<vmem>>, vector<2x32xf32>
    %1 = arith.truncf %0 : vector<2x32xf32> to vector<2x32xbf16>
    %c0_1 = arith.constant 0 : index
    %c0_2 = arith.constant 0 : index
    %2 = vector.load %arg3[%c0_1, %c0_2] : memref<32x32xbf16, #tpu.memory_space<vmem>>, vector<32x32xbf16>
    %cst = arith.constant dense<0.000000e+00> : vector<2x32xf32>
    %3 = tpu.matmul %1, %2, %cst {dimension_numbers = #tpu.dot_dimension_numbers<[1], [0], [0], [1], [0, 0, 1, 1], [], []>} : vector<2x32xbf16>, vector<32x32xbf16>, vector<2x32xf32> -> vector<2x32xf32>
    %c0_3 = arith.constant 0 : index
    %c0_4 = arith.constant 0 : index
    %4 = vector.load %arg4[%c0_3, %c0_4] : memref<1x32xf32, #tpu.memory_space<vmem>>, vector<1x32xf32>
    %5 = vector.broadcast %4 : vector<1x32xf32> to vector<2x32xf32>
    %6 = arith.addf %3, %5 : vector<2x32xf32>
    %7 = math.tanh %6 : vector<2x32xf32>
    %c0_5 = arith.constant 0 : index
    %c0_6 = arith.constant 0 : index
    %8 = vector.load %arg5[%c0_5, %c0_6] : memref<2x32xf32, #tpu.memory_space<vmem>>, vector<2x32xf32>
    tpu.vector_store %arg5[%c0_5, %c0_6], %7 {strides = array<i32>} : memref<2x32xf32, #tpu.memory_space<vmem>>, vector<2x32xf32>,
    return
  }
  func.func @transform_0(%arg0: i32, %arg1: i32) -> (i32, i32) {
    %c0_i32 = arith.constant 0 : i32
    %c0_i32_0 = arith.constant 0 : i32
    return %arg0, %c0_i32 : i32, i32
  }
  func.func @transform_1(%arg0: i32, %arg1: i32) -> (i32, i32) {
    %c0_i32 = arith.constant 0 : i32
    %c0_i32_0 = arith.constant 0 : i32
    return %c0_i32, %arg1 : i32, i32
  }
  func.func @transform_2(%arg0: i32, %arg1: i32) -> (i32, i32) {
    %c0_i32 = arith.constant 0 : i32
    %c0_i32_0 = arith.constant 0 : i32
    return %c0_i32, %arg1 : i32, i32
  }
  func.func @transform_3(%arg0: i32, %arg1: i32) -> (i32, i32) {
    %c0_i32 = arith.constant 0 : i32
    return %arg0, %arg1 : i32, i32
  }
}

module attributes {stable_mosaic.version = 11 : i64} {
  func.func @_ffn_kernel(%arg0: i32, %arg1: i32, %arg2: memref<16x32xf32, #tpu.memory_space<vmem>>, %arg3: memref<32x64xbf16, #tpu.memory_space<vmem>>, %arg4: memref<1x64xf32, #tpu.memory_space<vmem>>, %arg5: memref<64x32xbf16, #tpu.memory_space<vmem>>, %arg6: memref<1x32xf32, #tpu.memory_space<vmem>>, %arg7: memref<16x32xf32, #tpu.memory_space<vmem>>, %arg8: memref<1x32xf32, #tpu.memory_space<vmem>>, %arg9: memref<1x32xf32, #tpu.memory_space<vmem>>, %arg10: memref<16x32xf32, #tpu.memory_space<vmem>>) attributes {dimension_semantics = [#tpu.dimension_semantics<parallel>, #tpu.dimension_semantics<arbitrary>], iteration_bounds = array<i64: 1, 1>, scalar_prefetch = 0 : i64, scratch_operands = 0 : i64, tpu.core_type = #tpu.core_type<tc>, window_params = [{transform_indices = @transform_0, window_bounds = array<i64: 16, 32>}, {transform_indices = @transform_1, window_bounds = array<i64: 32, 64>}, {transform_indices = @transform_2, window_bounds = array<i64: 1, 64>}, {transform_indices = @transform_3, window_bounds = array<i64: 64, 32>}, {pipeline_mode = #tpu.pipeline_mode<synchronous>, transform_indices = @transform_4, window_bounds = array<i64: 1, 32>}, {transform_indices = @transform_5, window_bounds = array<i64: 16, 32>}, {pipeline_mode = #tpu.pipeline_mode<synchronous>, transform_indices = @transform_6, window_bounds = array<i64: 1, 32>}, {pipeline_mode = #tpu.pipeline_mode<synchronous>, transform_indices = @transform_7, window_bounds = array<i64: 1, 32>}, {transform_indices = @transform_8, window_bounds = array<i64: 16, 32>}]} {
    %c0_i32 = arith.constant 0 : i32
    %0 = arith.cmpi eq, %arg1, %c0_i32 : i32
    %1 = arith.extui %0 : i1 to i32
    %c0_i32_0 = arith.constant 0 : i32
    %2 = arith.cmpi ne, %1, %c0_i32_0 : i32
    scf.if %2 {
      %cst_19 = arith.constant 0.000000e+00 : f32
      %32 = vector.broadcast %cst_19 : f32 to vector<16x32xf32>
      %c0_20 = arith.constant 0 : index
      %c0_21 = arith.constant 0 : index
      %33 = vector.load %arg10[%c0_20, %c0_21] : memref<16x32xf32, #tpu.memory_space<vmem>>, vector<16x32xf32>
      tpu.vector_store %arg10[%c0_20, %c0_21], %32 {strides = array<i32>} : memref<16x32xf32, #tpu.memory_space<vmem>>, vector<16x32xf32>,
    } else {
    }
    %c0 = arith.constant 0 : index
    %c0_1 = arith.constant 0 : index
    %3 = vector.load %arg2[%c0, %c0_1] : memref<16x32xf32, #tpu.memory_space<vmem>>, vector<16x32xf32>
    %4 = arith.truncf %3 : vector<16x32xf32> to vector<16x32xbf16>
    %c0_2 = arith.constant 0 : index
    %c0_3 = arith.constant 0 : index
    %5 = vector.load %arg3[%c0_2, %c0_3] : memref<32x64xbf16, #tpu.memory_space<vmem>>, vector<32x64xbf16>
    %cst = arith.constant dense<0.000000e+00> : vector<16x64xf32>
    %6 = tpu.matmul %4, %5, %cst {dimension_numbers = #tpu.dot_dimension_numbers<[1], [0], [0], [1], [0, 0, 1, 1], [], []>} : vector<16x32xbf16>, vector<32x64xbf16>, vector<16x64xf32> -> vector<16x64xf32>
    %c0_4 = arith.constant 0 : index
    %c0_5 = arith.constant 0 : index
    %7 = vector.load %arg4[%c0_4, %c0_5] : memref<1x64xf32, #tpu.memory_space<vmem>>, vector<1x64xf32>
    %8 = vector.broadcast %7 : vector<1x64xf32> to vector<16x64xf32>
    %9 = arith.addf %6, %8 : vector<16x64xf32>
    %cst_6 = arith.constant 5.000000e-01 : f32
    %10 = vector.broadcast %cst_6 : f32 to vector<16x64xf32>
    %11 = arith.mulf %10, %9 : vector<16x64xf32>
    %cst_7 = arith.constant 4.471500e-02 : f32
    %12 = vector.broadcast %cst_7 : f32 to vector<16x64xf32>
    %13 = arith.mulf %12, %9 : vector<16x64xf32>
    %14 = arith.mulf %13, %9 : vector<16x64xf32>
    %15 = arith.mulf %14, %9 : vector<16x64xf32>
    %16 = arith.addf %9, %15 : vector<16x64xf32>
    %cst_8 = arith.constant 0.797884583 : f32
    %17 = vector.broadcast %cst_8 : f32 to vector<16x64xf32>
    %18 = arith.mulf %17, %16 : vector<16x64xf32>
    %19 = math.tanh %18 : vector<16x64xf32>
    %cst_9 = arith.constant 1.000000e+00 : f32
    %20 = vector.broadcast %cst_9 : f32 to vector<16x64xf32>
    %21 = arith.addf %20, %19 : vector<16x64xf32>
    %22 = arith.mulf %11, %21 : vector<16x64xf32>
    %c0_10 = arith.constant 0 : index
    %c0_11 = arith.constant 0 : index
    %23 = vector.load %arg10[%c0_10, %c0_11] : memref<16x32xf32, #tpu.memory_space<vmem>>, vector<16x32xf32>
    %24 = arith.truncf %22 : vector<16x64xf32> to vector<16x64xbf16>
    %c0_12 = arith.constant 0 : index
    %c0_13 = arith.constant 0 : index
    %25 = vector.load %arg5[%c0_12, %c0_13] : memref<64x32xbf16, #tpu.memory_space<vmem>>, vector<64x32xbf16>
    %cst_14 = arith.constant dense<0.000000e+00> : vector<16x32xf32>
    %26 = tpu.matmul %24, %25, %cst_14 {dimension_numbers = #tpu.dot_dimension_numbers<[1], [0], [0], [1], [0, 0, 1, 1], [], []>} : vector<16x64xbf16>, vector<64x32xbf16>, vector<16x32xf32> -> vector<16x32xf32>
    %27 = arith.addf %23, %26 : vector<16x32xf32>
    %c0_15 = arith.constant 0 : index
    %c0_16 = arith.constant 0 : index
    %28 = vector.load %arg10[%c0_15, %c0_16] : memref<16x32xf32, #tpu.memory_space<vmem>>, vector<16x32xf32>
    tpu.vector_store %arg10[%c0_15, %c0_16], %27 {strides = array<i32>} : memref<16x32xf32, #tpu.memory_space<vmem>>, vector<16x32xf32>,
    %c0_i32_17 = arith.constant 0 : i32
    %29 = arith.cmpi eq, %arg1, %c0_i32_17 : i32
    %30 = arith.extui %29 : i1 to i32
    %c0_i32_18 = arith.constant 0 : i32
    %31 = arith.cmpi ne, %30, %c0_i32_18 : i32
    scf.if %31 {
      %c0_19 = arith.constant 0 : index
      %c0_20 = arith.constant 0 : index
      %32 = vector.load %arg10[%c0_19, %c0_20] : memref<16x32xf32, #tpu.memory_space<vmem>>, vector<16x32xf32>
      %c0_21 = arith.constant 0 : index
      %c0_22 = arith.constant 0 : index
      %33 = vector.load %arg6[%c0_21, %c0_22] : memref<1x32xf32, #tpu.memory_space<vmem>>, vector<1x32xf32>
      %34 = vector.broadcast %33 : vector<1x32xf32> to vector<16x32xf32>
      %35 = arith.addf %32, %34 : vector<16x32xf32>
      %c0_23 = arith.constant 0 : index
      %c0_24 = arith.constant 0 : index
      %36 = vector.load %arg7[%c0_23, %c0_24] : memref<16x32xf32, #tpu.memory_space<vmem>>, vector<16x32xf32>
      %37 = arith.addf %35, %36 : vector<16x32xf32>
      %cst_25 = arith.constant dense<0.000000e+00> : vector<16xf32>
      %38 = vector.multi_reduction <add>, %37, %cst_25 [1] : vector<16x32xf32> to vector<16xf32>
      %39 = vector.shape_cast %38 : vector<16xf32> to vector<16x1xf32>
      %cst_26 = arith.constant 3.200000e+01 : f32
      %40 = vector.broadcast %cst_26 : f32 to vector<16x1xf32>
      %41 = arith.divf %39, %40 : vector<16x1xf32>
      %42 = vector.broadcast %41 : vector<16x1xf32> to vector<16x32xf32>
      %43 = arith.subf %37, %42 : vector<16x32xf32>
      %44 = arith.mulf %43, %43 : vector<16x32xf32>
      %cst_27 = arith.constant dense<0.000000e+00> : vector<16xf32>
      %45 = vector.multi_reduction <add>, %44, %cst_27 [1] : vector<16x32xf32> to vector<16xf32>
      %46 = vector.shape_cast %45 : vector<16xf32> to vector<16x1xf32>
      %cst_28 = arith.constant 3.200000e+01 : f32
      %47 = vector.broadcast %cst_28 : f32 to vector<16x1xf32>
      %48 = arith.divf %46, %47 : vector<16x1xf32>
      %49 = vector.broadcast %41 : vector<16x1xf32> to vector<16x32xf32>
      %50 = arith.subf %37, %49 : vector<16x32xf32>
      %cst_29 = arith.constant 9.99999996E-13 : f32
      %51 = vector.broadcast %cst_29 : f32 to vector<16x1xf32>
      %52 = arith.addf %48, %51 : vector<16x1xf32>
      %53 = math.rsqrt %52 : vector<16x1xf32>
      %54 = vector.broadcast %53 : vector<16x1xf32> to vector<16x32xf32>
      %55 = arith.mulf %50, %54 : vector<16x32xf32>
      %c0_30 = arith.constant 0 : index
      %c0_31 = arith.constant 0 : index
      %56 = vector.load %arg8[%c0_30, %c0_31] : memref<1x32xf32, #tpu.memory_space<vmem>>, vector<1x32xf32>
      %57 = vector.broadcast %56 : vector<1x32xf32> to vector<16x32xf32>
      %58 = arith.mulf %55, %57 : vector<16x32xf32>
      %c0_32 = arith.constant 0 : index
      %c0_33 = arith.constant 0 : index
      %59 = vector.load %arg9[%c0_32, %c0_33] : memref<1x32xf32, #tpu.memory_space<vmem>>, vector<1x32xf32>
      %60 = vector.broadcast %59 : vector<1x32xf32> to vector<16x32xf32>
      %61 = arith.addf %58, %60 : vector<16x32xf32>
      %c0_34 = arith.constant 0 : index
      %c0_35 = arith.constant 0 : index
      %62 = vector.load %arg10[%c0_34, %c0_35] : memref<16x32xf32, #tpu.memory_space<vmem>>, vector<16x32xf32>
      tpu.vector_store %arg10[%c0_34, %c0_35], %61 {strides = array<i32>} : memref<16x32xf32, #tpu.memory_space<vmem>>, vector<16x32xf32>,
    } else {
    }
    return
  }
  func.func @transform_0(%arg0: i32, %arg1: i32) -> (i32, i32) {
    %c0_i32 = arith.constant 0 : i32
    %c0_i32_0 = arith.constant 0 : i32
    return %arg0, %c0_i32 : i32, i32
  }
  func.func @transform_1(%arg0: i32, %arg1: i32) -> (i32, i32) {
    %c0_i32 = arith.constant 0 : i32
    %c0_i32_0 = arith.constant 0 : i32
    return %c0_i32, %arg1 : i32, i32
  }
  func.func @transform_2(%arg0: i32, %arg1: i32) -> (i32, i32) {
    %c0_i32 = arith.constant 0 : i32
    %c0_i32_0 = arith.constant 0 : i32
    return %c0_i32, %arg1 : i32, i32
  }
  func.func @transform_3(%arg0: i32, %arg1: i32) -> (i32, i32) {
    %c0_i32 = arith.constant 0 : i32
    %c0_i32_0 = arith.constant 0 : i32
    return %arg1, %c0_i32 : i32, i32
  }
  func.func @transform_4(%arg0: i32, %arg1: i32) -> (i32, i32) {
    %c0_i32 = arith.constant 0 : i32
    %c0_i32_0 = arith.constant 0 : i32
    %c0_i32_1 = arith.constant 0 : i32
    return %c0_i32, %c0_i32_0 : i32, i32
  }
  func.func @transform_5(%arg0: i32, %arg1: i32) -> (i32, i32) {
    %c0_i32 = arith.constant 0 : i32
    %c0_i32_0 = arith.constant 0 : i32
    return %arg0, %c0_i32 : i32, i32
  }
  func.func @transform_6(%arg0: i32, %arg1: i32) -> (i32, i32) {
    %c0_i32 = arith.constant 0 : i32
    %c0_i32_0 = arith.constant 0 : i32
    %c0_i32_1 = arith.constant 0 : i32
    return %c0_i32, %c0_i32_0 : i32, i32
  }
  func.func @transform_7(%arg0: i32, %arg1: i32) -> (i32, i32) {
    %c0_i32 = arith.constant 0 : i32
    %c0_i32_0 = arith.constant 0 : i32
    %c0_i32_1 = arith.constant 0 : i32
    return %c0_i32, %c0_i32_0 : i32, i32
  }
  func.func @transform_8(%arg0: i32, %arg1: i32) -> (i32, i32) {
    %c0_i32 = arith.constant 0 : i32
    %c0_i32_0 = arith.constant 0 : i32
    return %arg0, %c0_i32 : i32, i32
  }
}

module attributes {stable_mosaic.version = 11 : i64} {
  func.func @_head_kernel(%arg0: i32, %arg1: memref<2x32xf32, #tpu.memory_space<vmem>>, %arg2: memref<2x32xf32, #tpu.memory_space<vmem>>, %arg3: memref<2x32xf32, #tpu.memory_space<vmem>>, %arg4: memref<32x32xf32, #tpu.memory_space<vmem>>, %arg5: memref<32x32xf32, #tpu.memory_space<vmem>>, %arg6: memref<1x32xf32, #tpu.memory_space<vmem>>, %arg7: memref<32x32xf32, #tpu.memory_space<vmem>>, %arg8: memref<32x32xf32, #tpu.memory_space<vmem>>, %arg9: memref<1x32xf32, #tpu.memory_space<vmem>>, %arg10: memref<32x3xf32, #tpu.memory_space<vmem>>, %arg11: memref<32x3xf32, #tpu.memory_space<vmem>>, %arg12: memref<1x3xf32, #tpu.memory_space<vmem>>, %arg13: memref<2x3xf32, #tpu.memory_space<vmem>>) attributes {dimension_semantics = [#tpu.dimension_semantics<arbitrary>], iteration_bounds = array<i64: 1>, scalar_prefetch = 0 : i64, scratch_operands = 0 : i64, tpu.core_type = #tpu.core_type<tc>, window_params = [{pipeline_mode = #tpu.pipeline_mode<synchronous>, transform_indices = @transform_0, window_bounds = array<i64: 2, 32>}, {pipeline_mode = #tpu.pipeline_mode<synchronous>, transform_indices = @transform_1, window_bounds = array<i64: 2, 32>}, {pipeline_mode = #tpu.pipeline_mode<synchronous>, transform_indices = @transform_2, window_bounds = array<i64: 2, 32>}, {pipeline_mode = #tpu.pipeline_mode<synchronous>, transform_indices = @transform_3, window_bounds = array<i64: 32, 32>}, {pipeline_mode = #tpu.pipeline_mode<synchronous>, transform_indices = @transform_4, window_bounds = array<i64: 32, 32>}, {pipeline_mode = #tpu.pipeline_mode<synchronous>, transform_indices = @transform_5, window_bounds = array<i64: 1, 32>}, {pipeline_mode = #tpu.pipeline_mode<synchronous>, transform_indices = @transform_6, window_bounds = array<i64: 32, 32>}, {pipeline_mode = #tpu.pipeline_mode<synchronous>, transform_indices = @transform_7, window_bounds = array<i64: 32, 32>}, {pipeline_mode = #tpu.pipeline_mode<synchronous>, transform_indices = @transform_8, window_bounds = array<i64: 1, 32>}, {pipeline_mode = #tpu.pipeline_mode<synchronous>, transform_indices = @transform_9, window_bounds = array<i64: 32, 3>}, {pipeline_mode = #tpu.pipeline_mode<synchronous>, transform_indices = @transform_10, window_bounds = array<i64: 32, 3>}, {pipeline_mode = #tpu.pipeline_mode<synchronous>, transform_indices = @transform_11, window_bounds = array<i64: 1, 3>}, {pipeline_mode = #tpu.pipeline_mode<synchronous>, transform_indices = @transform_12, window_bounds = array<i64: 2, 3>}]} {
    %c0 = arith.constant 0 : index
    %c0_0 = arith.constant 0 : index
    %0 = vector.load %arg1[%c0, %c0_0] : memref<2x32xf32, #tpu.memory_space<vmem>>, vector<2x32xf32>
    %c0_1 = arith.constant 0 : index
    %c0_2 = arith.constant 0 : index
    %1 = vector.load %arg2[%c0_1, %c0_2] : memref<2x32xf32, #tpu.memory_space<vmem>>, vector<2x32xf32>
    %c0_3 = arith.constant 0 : index
    %c0_4 = arith.constant 0 : index
    %2 = vector.load %arg3[%c0_3, %c0_4] : memref<2x32xf32, #tpu.memory_space<vmem>>, vector<2x32xf32>
    %c0_5 = arith.constant 0 : index
    %c0_6 = arith.constant 0 : index
    %3 = vector.load %arg4[%c0_5, %c0_6] : memref<32x32xf32, #tpu.memory_space<vmem>>, vector<32x32xf32>
    %cst = arith.constant dense<0.000000e+00> : vector<2x32xf32>
    %4 = tpu.matmul %0, %3, %cst {dimension_numbers = #tpu.dot_dimension_numbers<[1], [0], [0], [1], [0, 0, 1, 1], [], []>} : vector<2x32xf32>, vector<32x32xf32>, vector<2x32xf32> -> vector<2x32xf32>
    %c0_7 = arith.constant 0 : index
    %c0_8 = arith.constant 0 : index
    %5 = vector.load %arg5[%c0_7, %c0_8] : memref<32x32xf32, #tpu.memory_space<vmem>>, vector<32x32xf32>
    %cst_9 = arith.constant dense<0.000000e+00> : vector<2x32xf32>
    %6 = tpu.matmul %1, %5, %cst_9 {dimension_numbers = #tpu.dot_dimension_numbers<[1], [0], [0], [1], [0, 0, 1, 1], [], []>} : vector<2x32xf32>, vector<32x32xf32>, vector<2x32xf32> -> vector<2x32xf32>
    %7 = arith.addf %4, %6 : vector<2x32xf32>
    %c0_10 = arith.constant 0 : index
    %c0_11 = arith.constant 0 : index
    %8 = vector.load %arg6[%c0_10, %c0_11] : memref<1x32xf32, #tpu.memory_space<vmem>>, vector<1x32xf32>
    %9 = vector.broadcast %8 : vector<1x32xf32> to vector<2x32xf32>
    %10 = arith.addf %7, %9 : vector<2x32xf32>
    %c0_12 = arith.constant 0 : index
    %c0_13 = arith.constant 0 : index
    %11 = vector.load %arg7[%c0_12, %c0_13] : memref<32x32xf32, #tpu.memory_space<vmem>>, vector<32x32xf32>
    %cst_14 = arith.constant dense<0.000000e+00> : vector<2x32xf32>
    %12 = tpu.matmul %2, %11, %cst_14 {dimension_numbers = #tpu.dot_dimension_numbers<[1], [0], [0], [1], [0, 0, 1, 1], [], []>} : vector<2x32xf32>, vector<32x32xf32>, vector<2x32xf32> -> vector<2x32xf32>
    %c0_15 = arith.constant 0 : index
    %c0_16 = arith.constant 0 : index
    %13 = vector.load %arg8[%c0_15, %c0_16] : memref<32x32xf32, #tpu.memory_space<vmem>>, vector<32x32xf32>
    %cst_17 = arith.constant dense<0.000000e+00> : vector<2x32xf32>
    %14 = tpu.matmul %1, %13, %cst_17 {dimension_numbers = #tpu.dot_dimension_numbers<[1], [0], [0], [1], [0, 0, 1, 1], [], []>} : vector<2x32xf32>, vector<32x32xf32>, vector<2x32xf32> -> vector<2x32xf32>
    %15 = arith.addf %12, %14 : vector<2x32xf32>
    %c0_18 = arith.constant 0 : index
    %c0_19 = arith.constant 0 : index
    %16 = vector.load %arg9[%c0_18, %c0_19] : memref<1x32xf32, #tpu.memory_space<vmem>>, vector<1x32xf32>
    %17 = vector.broadcast %16 : vector<1x32xf32> to vector<2x32xf32>
    %18 = arith.addf %15, %17 : vector<2x32xf32>
    %c0_20 = arith.constant 0 : index
    %c0_21 = arith.constant 0 : index
    %19 = vector.load %arg10[%c0_20, %c0_21] : memref<32x3xf32, #tpu.memory_space<vmem>>, vector<32x3xf32>
    %cst_22 = arith.constant dense<0.000000e+00> : vector<2x3xf32>
    %20 = tpu.matmul %10, %19, %cst_22 {dimension_numbers = #tpu.dot_dimension_numbers<[1], [0], [0], [1], [0, 0, 1, 1], [], []>} : vector<2x32xf32>, vector<32x3xf32>, vector<2x3xf32> -> vector<2x3xf32>
    %c0_23 = arith.constant 0 : index
    %c0_24 = arith.constant 0 : index
    %21 = vector.load %arg11[%c0_23, %c0_24] : memref<32x3xf32, #tpu.memory_space<vmem>>, vector<32x3xf32>
    %cst_25 = arith.constant dense<0.000000e+00> : vector<2x3xf32>
    %22 = tpu.matmul %18, %21, %cst_25 {dimension_numbers = #tpu.dot_dimension_numbers<[1], [0], [0], [1], [0, 0, 1, 1], [], []>} : vector<2x32xf32>, vector<32x3xf32>, vector<2x3xf32> -> vector<2x3xf32>
    %23 = arith.addf %20, %22 : vector<2x3xf32>
    %c0_26 = arith.constant 0 : index
    %c0_27 = arith.constant 0 : index
    %24 = vector.load %arg12[%c0_26, %c0_27] : memref<1x3xf32, #tpu.memory_space<vmem>>, vector<1x3xf32>
    %25 = vector.broadcast %24 : vector<1x3xf32> to vector<2x3xf32>
    %26 = arith.addf %23, %25 : vector<2x3xf32>
    %cst_28 = arith.constant dense<0xFF800000> : vector<2xf32>
    %27 = vector.multi_reduction <maximumf>, %26, %cst_28 [1] : vector<2x3xf32> to vector<2xf32>
    %28 = vector.shape_cast %27 : vector<2xf32> to vector<2x1xf32>
    %29 = vector.broadcast %28 : vector<2x1xf32> to vector<2x3xf32>
    %30 = arith.subf %26, %29 : vector<2x3xf32>
    %31 = math.exp %30 : vector<2x3xf32>
    %cst_29 = arith.constant dense<0.000000e+00> : vector<2xf32>
    %32 = vector.multi_reduction <add>, %31, %cst_29 [1] : vector<2x3xf32> to vector<2xf32>
    %33 = vector.shape_cast %32 : vector<2xf32> to vector<2x1xf32>
    %34 = math.log %33 : vector<2x1xf32>
    %35 = vector.broadcast %34 : vector<2x1xf32> to vector<2x3xf32>
    %36 = arith.subf %30, %35 : vector<2x3xf32>
    %c0_30 = arith.constant 0 : index
    %c0_31 = arith.constant 0 : index
    %37 = vector.load %arg13[%c0_30, %c0_31] : memref<2x3xf32, #tpu.memory_space<vmem>>, vector<2x3xf32>
    tpu.vector_store %arg13[%c0_30, %c0_31], %36 {strides = array<i32>} : memref<2x3xf32, #tpu.memory_space<vmem>>, vector<2x3xf32>,
    return
  }
  func.func @transform_0(%arg0: i32) -> (i32, i32) {
    %c0_i32 = arith.constant 0 : i32
    %c0_i32_0 = arith.constant 0 : i32
    %c0_i32_1 = arith.constant 0 : i32
    return %c0_i32, %c0_i32_0 : i32, i32
  }
  func.func @transform_1(%arg0: i32) -> (i32, i32) {
    %c0_i32 = arith.constant 0 : i32
    %c0_i32_0 = arith.constant 0 : i32
    %c0_i32_1 = arith.constant 0 : i32
    return %c0_i32, %c0_i32_0 : i32, i32
  }
  func.func @transform_2(%arg0: i32) -> (i32, i32) {
    %c0_i32 = arith.constant 0 : i32
    %c0_i32_0 = arith.constant 0 : i32
    %c0_i32_1 = arith.constant 0 : i32
    return %c0_i32, %c0_i32_0 : i32, i32
  }
  func.func @transform_3(%arg0: i32) -> (i32, i32) {
    %c0_i32 = arith.constant 0 : i32
    %c0_i32_0 = arith.constant 0 : i32
    %c0_i32_1 = arith.constant 0 : i32
    return %c0_i32, %c0_i32_0 : i32, i32
  }
  func.func @transform_4(%arg0: i32) -> (i32, i32) {
    %c0_i32 = arith.constant 0 : i32
    %c0_i32_0 = arith.constant 0 : i32
    %c0_i32_1 = arith.constant 0 : i32
    return %c0_i32, %c0_i32_0 : i32, i32
  }
  func.func @transform_5(%arg0: i32) -> (i32, i32) {
    %c0_i32 = arith.constant 0 : i32
    %c0_i32_0 = arith.constant 0 : i32
    %c0_i32_1 = arith.constant 0 : i32
    return %c0_i32, %c0_i32_0 : i32, i32
  }
  func.func @transform_6(%arg0: i32) -> (i32, i32) {
    %c0_i32 = arith.constant 0 : i32
    %c0_i32_0 = arith.constant 0 : i32
    %c0_i32_1 = arith.constant 0 : i32
    return %c0_i32, %c0_i32_0 : i32, i32
  }
  func.func @transform_7(%arg0: i32) -> (i32, i32) {
    %c0_i32 = arith.constant 0 : i32
    %c0_i32_0 = arith.constant 0 : i32
    %c0_i32_1 = arith.constant 0 : i32
    return %c0_i32, %c0_i32_0 : i32, i32
  }
  func.func @transform_8(%arg0: i32) -> (i32, i32) {
    %c0_i32 = arith.constant 0 : i32
    %c0_i32_0 = arith.constant 0 : i32
    %c0_i32_1 = arith.constant 0 : i32
    return %c0_i32, %c0_i32_0 : i32, i32
  }
  func.func @transform_9(%arg0: i32) -> (i32, i32) {
    %c0_i32 = arith.constant 0 : i32
    %c0_i32_0 = arith.constant 0 : i32
    %c0_i32_1 = arith.constant 0 : i32
    return %c0_i32, %c0_i32_0 : i32, i32
  }
  func.func @transform_10(%arg0: i32) -> (i32, i32) {
    %c0_i32 = arith.constant 0 : i32
    %c0_i32_0 = arith.constant 0 : i32
    %c0_i32_1 = arith.constant 0 : i32
    return %c0_i32, %c0_i32_0 : i32, i32
  }
  func.func @transform_11(%arg0: i32) -> (i32, i32) {
    %c0_i32 = arith.constant 0 : i32
    %c0_i32_0 = arith.constant 0 : i32
    %c0_i32_1 = arith.constant 0 : i32
    return %c0_i32, %c0_i32_0 : i32, i32
  }
  func.func @transform_12(%arg0: i32) -> (i32, i32) {
    %c0_i32 = arith.constant 0 : i32
    %c0_i32_0 = arith.constant 0 : i32
    %c0_i32_1 = arith.constant 0 : i32
    return %c0_i32, %c0_i32_0 : i32, i32
  }
}

</mosaic_0001>

<llo_original>
// kernel: melbert_forward.23
$region0: #{melbert_forward.23}
  #allocation0 [shape = 'u32[]', space=smem, size = 0x4, offset = 0x4, fixed_abs, tag = 'smem constant byte address 0x4 - core index']
  #allocation1 [shape = 'u32[72,128]{1,0:T(1,128)}', space=vmem, size = 0x9000, scoped, tag = 'internal scratch']
  %s0 = inlined_call_operand.vmem [shape: bf16[2,8,96], index: 0, kind: input, shape index: {}]
  %s1 = inlined_call_operand.vmem [shape: f32[2,1,8], index: 1, kind: input, shape index: {}]
  %s2 = inlined_call_operand.vmem [shape: bf16[2,8,32], index: 2, kind: output, shape index: {}]
  %s3 = sld [smem:[#allocation0]]
  $region41: #{melbert_forward.23} parent=0
    _
  %s5 = ssub.s32 1, %s3
  %s6 = scalar_select 0, %s5, %s3
  loop: start=0, step=1, limit=4
  $region2: #{melbert_forward.23} parent=0 // loop_pre_header
    _
  $region3: #{melbert_forward.23} parent=0 // loop_header
    %s8 = sphi 0, %s12
    %p9 = scmp.ge.s32.totalorder %s8, 4
    %s18 = sphi 0, %s20
    %s21 = sphi 0, %s18
    %s22 = sphi 0, %s21
    %s38 = sphi 0, %s22
    %s44 = sphi 0, %s46
    %s47 = sphi 0, %s44
    %s48 = sphi 0, %s47
    %s64 = sphi 0, %s48
    %s70 = sphi 0, %s72
    %s73 = sphi 0, %s70
    %s74 = sphi 0, %s73
    %s90 = sphi 0, %s74
  $region4: #{melbert_forward.23} parent=0 // loop_header_branch
    %11 = sbr.rel (%p9) target = $region8
  $region5: #{melbert_forward.23} parent=0 // loop_body
    %s13 = ssub.s32 %s8, 1
    %s14 = ssub.s32 %s8, 2
    %s15 = sadd.s32 %s8, 1
    %s16 = ssub.s32 %s8, %s15
    %p17 = scmp.eq.s32.totalorder %s16, 0
    %s19 = sadd.s32 %s18, 1
    %s20 = scalar_select %p17, %s18, %s19
    %p23 = pneg %p17
    %p24 = scmp.eq.s32.totalorder %s8, 1
    %p25 = por %p23, %p24
    %p26 = scmp.ne.s32.totalorder %s18, %s21
    %p27 = scmp.eq.s32.totalorder %s8, 0
    %p28 = por %p26, %p27
    %p29 = scmp.ne.s32.totalorder %s18, %s21
    %p30 = scmp.eq.s32.totalorder %s13, 1
    %p31 = por %p29, %p30
    %p32 = scmp.ne.s32.totalorder %s21, %s22
    %p33 = scmp.eq.s32.totalorder %s13, 0
    %p34 = por %p32, %p33
    %p35 = scmp.ne.s32.totalorder %s21, %s22
    %p36 = scmp.eq.s32.totalorder %s14, 1
    %p37 = por %p35, %p36
    %p39 = scmp.ne.s32.totalorder %s22, %s38
    %p40 = scmp.eq.s32.totalorder %s14, 0
    %p41 = por %p39, %p40
    %s42 = ssub.s32 %s8, %s15
    %p43 = scmp.eq.s32.totalorder %s42, 0
    %s45 = sadd.s32 %s44, 1
    %s46 = scalar_select %p43, %s44, %s45
    %p49 = pneg %p43
    %p50 = scmp.eq.s32.totalorder %s8, 1
    %p51 = por %p49, %p50
    %p52 = scmp.ne.s32.totalorder %s44, %s47
    %p53 = scmp.eq.s32.totalorder %s8, 0
    %p54 = por %p52, %p53
    %p55 = scmp.ne.s32.totalorder %s44, %s47
    %p56 = scmp.eq.s32.totalorder %s13, 1
    %p57 = por %p55, %p56
    %p58 = scmp.ne.s32.totalorder %s47, %s48
    %p59 = scmp.eq.s32.totalorder %s13, 0
    %p60 = por %p58, %p59
    %p61 = scmp.ne.s32.totalorder %s47, %s48
    %p62 = scmp.eq.s32.totalorder %s14, 1
    %p63 = por %p61, %p62
    %p65 = scmp.ne.s32.totalorder %s48, %s64
    %p66 = scmp.eq.s32.totalorder %s14, 0
    %p67 = por %p65, %p66
    %s68 = ssub.s32 %s8, %s15
    %p69 = scmp.eq.s32.totalorder %s68, 0
    %s71 = sadd.s32 %s70, 1
    %s72 = scalar_select %p69, %s70, %s71
    %p75 = pneg %p69
    %p76 = scmp.eq.s32.totalorder %s8, 1
    %p77 = por %p75, %p76
    %p78 = scmp.ne.s32.totalorder %s70, %s73
    %p79 = scmp.eq.s32.totalorder %s8, 0
    %p80 = por %p78, %p79
    %p81 = scmp.ne.s32.totalorder %s70, %s73
    %p82 = scmp.eq.s32.totalorder %s13, 1
    %p83 = por %p81, %p82
    %p84 = scmp.ne.s32.totalorder %s73, %s74
    %p85 = scmp.eq.s32.totalorder %s13, 0
    %p86 = por %p84, %p85
    %p87 = scmp.ne.s32.totalorder %s73, %s74
    %p88 = scmp.eq.s32.totalorder %s14, 1
    %p89 = por %p87, %p88
    %p91 = scmp.ne.s32.totalorder %s74, %s90
    %p92 = scmp.eq.s32.totalorder %s14, 0
    %p93 = por %p91, %p92
    %p94 = scmp.le.s32.totalorder 1, %s8
    %p95 = scmp.lt.s32.totalorder %s8, 3
    %p96 = pnand %p94, %p95
    %p97 = pneg %p96
    // Predicated region
    $region9: #{melbert_forward.23} parent=5 // pred_check
      _
    $region10: #{melbert_forward.23} parent=5 // pred_check_branch
      %99 = sbr.rel (%p96) target = $region12
    $region11: #{melbert_forward.23} parent=5 // pred_region
      %s100 = ssub.s32 %s8, 1
    $region12: #{melbert_forward.23} parent=5 // pred_fallthru
      _
    %p101 = scmp.lt.s32.totalorder %s8, 2
    // Predicated region
    $region13: #{melbert_forward.23} parent=5 // pred_check
      %p102 = pneg %p101
    $region14: #{melbert_forward.23} parent=5 // pred_check_branch
      %104 = sbr.rel (%p102) target = $region16
    $region15: #{melbert_forward.23} parent=5 // pred_region
      // Predicated region
      $region17: #{melbert_forward.23} parent=15 // pred_check
        %p105 = pneg %p28
      $region18: #{melbert_forward.23} parent=15 // pred_check_branch
        %107 = sbr.rel (%p105) target = $region20
      $region19: #{melbert_forward.23} parent=15 // pred_region
        %p108 = scmp.lt.s32.totalorder %s8, 1
        %s109 = scalar_select %p108, %s8, 1
        %s110 = smul.addr %s109, 4
        %s111 = scalar_lea.vmem %s0, %s110
      $region20: #{melbert_forward.23} parent=15 // pred_fallthru
        _
      // Predicated region
      $region21: #{melbert_forward.23} parent=15 // pred_check
        %p112 = pneg %p54
      $region22: #{melbert_forward.23} parent=15 // pred_check_branch
        %114 = sbr.rel (%p112) target = $region24
      $region23: #{melbert_forward.23} parent=15 // pred_region
        %p115 = scmp.lt.s32.totalorder %s8, 1
        %s116 = scalar_select %p115, %s8, 1
        %s117 = scalar_lea.vmem %s1, %s116
      $region24: #{melbert_forward.23} parent=15 // pred_fallthru
        _
    $region16: #{melbert_forward.23} parent=5 // pred_fallthru
      _
    %p118 = scmp.le.s32.totalorder 1, %s8
    %p119 = scmp.lt.s32.totalorder %s8, 3
    %p120 = pnand %p118, %p119
    %p121 = pneg %p120
    // Predicated region
    $region25: #{melbert_forward.23} parent=5 // pred_check
      _
    $region26: #{melbert_forward.23} parent=5 // pred_check_branch
      %123 = sbr.rel (%p120) target = $region28
    $region27: #{melbert_forward.23} parent=5 // pred_region
      %s124 = ssub.s32 %s8, 1
      %p125 = scmp.lt.s32.totalorder %s13, 1
      %s126 = scalar_select %p125, %s13, 1
      %s127 = smul.addr %s126, 4
      %s128 = scalar_lea.vmem %s0, %s127
      %p129 = pneg %p34
      %p130 = pneg %p31
      %p131 = scmp.lt.s32.totalorder %s13, 1
      %s132 = scalar_select %p131, %s13, 1
      %s133 = scalar_lea.vmem %s1, %s132
      %p134 = pneg %p60
      %p135 = pneg %p57
      %p136 = pneg %p86
      %p137 = pneg %p83
      %p138 = scmp.lt.s32.totalorder %s13, 1
      %s139 = scalar_select %p138, %s13, 1
      %s140 = smul.addr %s139, 4
      %s141 = scalar_lea.vmem %s2, %s140
      %p142 = scmp.lt.s32.totalorder %s13, 1
      %s143 = scalar_select %p142, %s13, 1
      %s144 = smul.addr %s143, 4
      %s145 = scalar_lea.vmem %s0, %s144
      %p146 = scmp.lt.s32.totalorder %s13, 1
      %s147 = scalar_select %p146, %s13, 1
      %s148 = scalar_lea.vmem %s1, %s147
      %p149 = scmp.lt.s32.totalorder %s13, 1
      %s150 = scalar_select %p149, %s13, 1
      %s151 = smul.addr %s150, 4
      %s152 = scalar_lea.vmem %s2, %s151
      %v154 = vld [vmem:[%s145] sm:$0xf]
      %v155 = vld [vmem:[%s148] sm:$0x1]
      %v156 = vunpack.c.l.bf16 %v154
      %v157 = vmul.f32 %v156, 0.25
      %v158 = vpack.c.bf16 %v157, %v157
      %v160 = vperm.slane %v155, 0
      %v163 = vunpack.c.l.b16 %v154
      %v164 = vpack.c.b16 %v163, %v163
      %165 = vrot.lane.b32.xlu0 %v164, 96
      %v166 = vpop.permute.xlu0 %165
      %vm167 = vcmask 130048
      %v169 = vsel %vm167, %v158, 0
      %v172 = vsel %vm167, %v166, 0
      %174 = vmatpush.bf16.xpose.msra.mxu0 0
      %175 = vmatpush.bf16.xpose.msra.mxu0 0
      %176 = vmatpush.bf16.xpose.msra.mxu0 0
      %177 = vmatpush.bf16.xpose.msra.mxu0 0
      %178 = vmatpush.bf16.xpose.msra.mxu0 0
      %179 = vmatpush.bf16.xpose.msra.mxu0 0
      %180 = vmatpush.bf16.xpose.msra.mxu0 0
      %181 = vmatpush.bf16.xpose.msra.mxu0 %v172
      %182 = vmatmul.bf16.gmra.mxu0 %v169
      %v183 = vpop.f32.mrf.mxu0
      %v184 = vadd.f32 %v160, %v183
      %v185 = vpop.f32.mrf.mxu0
      %186 = vdwg.mxu0
      %vm187 = vcmask 64512
      %v188 = vsel %vm187, %v184, -inf
      %189 = vmax.xlane.f32.xlu0 %v188
      %v190 = vpop.xlane.xlu0 %189
      %v191 = vsub.f32 %v184, %v190
      %v192 = vmul.f32 %v191, 1.442695
      %v193 = vpow.pop %v192
      %v194 = vsel %vm187, %v193, 0.0
      %195 = vadd.xlane.f32.xlu0 %v194
      %v196 = vpop.xlane.xlu0 %195
      %v197 = vrcp.pop %v196
      %v198 = vmul.f32 %v193, %v197
      %v199 = vpack.c.bf16 %v198, %v198
      %200 = vrot.lane.b32.xlu0 %v164, 64
      %v201 = vpop.permute.xlu0 %200
      %v203 = vsel %vm187, %v199, 0
      %vm205 = vcmask 1043456
      %v207 = vsel %vm205, %v201, 0
      %209 = vmatpush.bf16.msra.mxu0 0
      %210 = vmatpush.bf16.msra.mxu0 0
      %211 = vmatpush.bf16.msra.mxu0 0
      %212 = vmatpush.bf16.msra.mxu0 0
      %213 = vmatpush.bf16.msra.mxu0 0
      %214 = vmatpush.bf16.msra.mxu0 0
      %215 = vmatpush.bf16.msra.mxu0 0
      %216 = vmatpush.bf16.msra.mxu0 %v207
      %217 = vmatmul.bf16.gmra.mxu0 %v203
      %v218 = vpop.f32.mrf.mxu0
      %v219 = vadd.f32 0.0, %v218
      %v220 = vpop.f32.mrf.mxu0
      %221 = vdwg.mxu0
      %223 = vrot.lane.b32.xlu0 %v158, 112
      %v224 = vpop.permute.xlu0 %223
      %225 = vrot.lane.b32.xlu0 %v164, 80
      %v226 = vpop.permute.xlu0 %225
      %v228 = vsel %vm167, %v224, 0
      %v231 = vsel %vm167, %v226, 0
      %233 = vmatpush.bf16.xpose.msra.mxu0 0
      %234 = vmatpush.bf16.xpose.msra.mxu0 0
      %235 = vmatpush.bf16.xpose.msra.mxu0 0
      %236 = vmatpush.bf16.xpose.msra.mxu0 0
      %237 = vmatpush.bf16.xpose.msra.mxu0 0
      %238 = vmatpush.bf16.xpose.msra.mxu0 0
      %239 = vmatpush.bf16.xpose.msra.mxu0 0
      %240 = vmatpush.bf16.xpose.msra.mxu0 %v231
      %241 = vmatmul.bf16.gmra.mxu0 %v228
      %v242 = vpop.f32.mrf.mxu0
      %v243 = vadd.f32 %v160, %v242
      %v244 = vpop.f32.mrf.mxu0
      %245 = vdwg.mxu0
      %v246 = vsel %vm187, %v243, -inf
      %247 = vmax.xlane.f32.xlu0 %v246
      %v248 = vpop.xlane.xlu0 %247
      %v249 = vsub.f32 %v243, %v248
      %v250 = vmul.f32 %v249, 1.442695
      %v251 = vpow.pop %v250
      %v252 = vsel %vm187, %v251, 0.0
      %253 = vadd.xlane.f32.xlu0 %v252
      %v254 = vpop.xlane.xlu0 %253
      %v255 = vrcp.pop %v254
      %v256 = vmul.f32 %v251, %v255
      %v257 = vpack.c.bf16 %v256, %v256
      %258 = vrot.lane.b32.xlu0 %v164, 48
      %v259 = vpop.permute.xlu0 %258
      %v261 = vsel %vm187, %v257, 0
      %v264 = vsel %vm205, %v259, 0
      %266 = vmatpush.bf16.msra.mxu0 0
      %267 = vmatpush.bf16.msra.mxu0 0
      %268 = vmatpush.bf16.msra.mxu0 0
      %269 = vmatpush.bf16.msra.mxu0 0
      %270 = vmatpush.bf16.msra.mxu0 0
      %271 = vmatpush.bf16.msra.mxu0 0
      %272 = vmatpush.bf16.msra.mxu0 0
      %273 = vmatpush.bf16.msra.mxu0 %v264
      %274 = vmatmul.bf16.gmra.mxu0 %v261
      %v275 = vpop.f32.mrf.mxu0
      %v276 = vadd.f32 0.0, %v275
      %v277 = vpop.f32.mrf.mxu0
      %278 = vdwg.mxu0
      %280 = vrot.lane.b32.xlu0 %v276, 16
      %v281 = vpop.permute.xlu0 %280
      %v283 = vsel %vm167, %v219, %v281
      %v284 = vpack.c.bf16 %v283, %v283
      %vm285 = vcmask 257024
      %286 = vst.msk [vmem:[%s152] sm:$0xf] %vm285, %v284
      %p287 = scmp.lt.s32.totalorder %s13, 1
      %s288 = scalar_select %p287, %s13, 1
      %s289 = smul.addr %s288, 4
      %s290 = scalar_lea.vmem %s2, %s289
      // Predicated region
      $region29: #{melbert_forward.23} parent=27 // pred_check
        %p291 = pneg %p83
      $region30: #{melbert_forward.23} parent=27 // pred_check_branch
        %293 = sbr.rel (%p291) target = $region32
      $region31: #{melbert_forward.23} parent=27 // pred_region
        _
      $region32: #{melbert_forward.23} parent=27 // pred_fallthru
        _
    $region28: #{melbert_forward.23} parent=5 // pred_fallthru
      _
    %p294 = scmp.le.s32.totalorder 2, %s8
    // Predicated region
    $region33: #{melbert_forward.23} parent=5 // pred_check
      %p295 = pneg %p294
    $region34: #{melbert_forward.23} parent=5 // pred_check_branch
      %297 = sbr.rel (%p295) target = $region36
    $region35: #{melbert_forward.23} parent=5 // pred_region
      %s298 = ssub.s32 %s8, 2
      // Predicated region
      $region37: #{melbert_forward.23} parent=35 // pred_check
        %p299 = pneg %p89
      $region38: #{melbert_forward.23} parent=35 // pred_check_branch
        %301 = sbr.rel (%p299) target = $region40
      $region39: #{melbert_forward.23} parent=35 // pred_region
        %p302 = scmp.lt.s32.totalorder %s14, 1
        %s303 = scalar_select %p302, %s14, 1
        %s304 = smul.addr %s303, 4
        %s305 = scalar_lea.vmem %s2, %s304
      $region40: #{melbert_forward.23} parent=35 // pred_fallthru
        _
    $region36: #{melbert_forward.23} parent=5 // pred_fallthru
      _
  $region6: #{melbert_forward.23} parent=0 // loop_footer
    %s12 = sadd.s32 1, %s8
  $region7: #{melbert_forward.23} parent=0 // loop_footer_branch
    %7 = sbr.rel target = $region3
  $region8: #{melbert_forward.23} parent=0 // loop_exit
    _

// kernel: melbert_forward.31
$region0: #{melbert_forward.31}
  #allocation0 [shape = 'u32[]', space=smem, size = 0x4, offset = 0x4, fixed_abs, tag = 'smem constant byte address 0x4 - core index']
  #allocation1 [shape = 'u32[72,128]{1,0:T(1,128)}', space=vmem, size = 0x9000, scoped, tag = 'internal scratch']
  %s0 = inlined_call_operand.vmem [shape: f32[16,32], index: 0, kind: input, shape index: {}]
  %s1 = inlined_call_operand.vmem [shape: f32[1,32], index: 1, kind: input, shape index: {}]
  %s2 = inlined_call_operand.vmem [shape: f32[1,32], index: 2, kind: input, shape index: {}]
  %s3 = inlined_call_operand.vmem [shape: f32[16,32], index: 3, kind: output, shape index: {}]
  %s4 = sld [smem:[#allocation0]]
  $region22: #{melbert_forward.31} parent=0
    _
  %s6 = ssub.s32 1, %s4
  %s7 = scalar_select 0, %s6, %s4
  // Predicated region
  $region2: #{melbert_forward.31} parent=0 // pred_check
    _
  $region3: #{melbert_forward.31} parent=0 // pred_check_branch
    %9 = sbr.rel (0) target = $region5
  $region4: #{melbert_forward.31} parent=0 // pred_region
    _
  $region5: #{melbert_forward.31} parent=0 // pred_fallthru
    _
  // Predicated region
  $region6: #{melbert_forward.31} parent=0 // pred_check
    _
  $region7: #{melbert_forward.31} parent=0 // pred_check_branch
    %11 = sbr.rel (0) target = $region9
  $region8: #{melbert_forward.31} parent=0 // pred_region
    _
  $region9: #{melbert_forward.31} parent=0 // pred_fallthru
    _
  // Predicated region
  $region10: #{melbert_forward.31} parent=0 // pred_check
    _
  $region11: #{melbert_forward.31} parent=0 // pred_check_branch
    %13 = sbr.rel (0) target = $region13
  $region12: #{melbert_forward.31} parent=0 // pred_region
    _
  $region13: #{melbert_forward.31} parent=0 // pred_fallthru
    _
  %v14 = vld [vmem:[%s0] sm:$0xff]
  %v15 = vld [vmem:[%s0 + $0x8] sm:$0xff]
  %vm16 = vcmask 261120
  %v17 = vsel %vm16, %v14, 0.0
  %18 = vadd.xlane.f32.xlu0 %v17
  %v19 = vpop.xlane.xlu0 %18
  %v20 = vsel %vm16, %v15, 0.0
  %21 = vadd.xlane.f32.xlu0 %v20
  %v22 = vpop.xlane.xlu0 %21
  %v23 = vrcp.pop 32.0
  %v24 = vmul.f32 32.0, %v23
  %v25 = vsub.f32 1.0, %v24
  %v26 = vmul.f32 %v23, %v25
  %v27 = vadd.f32 %v23, %v26
  %vm28 = vweird.f32 %v23
  %v29 = vsel %vm28, %v23, %v27
  %v30 = vmul.f32 %v19, %v29
  %v31 = vmul.f32 %v22, %v29
  %v32 = vsub.f32 %v14, %v30
  %v33 = vsub.f32 %v15, %v31
  %v34 = vmul.f32 %v32, %v32
  %v35 = vmul.f32 %v33, %v33
  %v36 = vsel %vm16, %v34, 0.0
  %37 = vadd.xlane.f32.xlu0 %v36
  %v38 = vpop.xlane.xlu0 %37
  %v39 = vsel %vm16, %v35, 0.0
  %40 = vadd.xlane.f32.xlu0 %v39
  %v41 = vpop.xlane.xlu0 %40
  %v42 = vmul.f32 %v38, %v29
  %v43 = vmul.f32 %v41, %v29
  %v44 = vadd.f32 %v42, 1e-12
  %v45 = vadd.f32 %v43, 1e-12
  %v46 = vrsqrt.pop %v44
  %v47 = vmul.f32 %v46, %v44
  %v48 = vmul.f32 %v47, %v46
  %v49 = vmul.f32 0.5, %v48
  %v50 = vsub.f32 1.5, %v49
  %v51 = vmul.f32 %v46, %v50
  %vm52 = vweird.f32 %v44
  %vm53 = vweird.f32 %v46
  %vm54 = vmor %vm52, %vm53
  %v55 = vsel %vm54, %v46, %v51
  %v56 = vrsqrt.pop %v45
  %v57 = vmul.f32 %v56, %v45
  %v58 = vmul.f32 %v57, %v56
  %v59 = vmul.f32 0.5, %v58
  %v60 = vsub.f32 1.5, %v59
  %v61 = vmul.f32 %v56, %v60
  %vm62 = vweird.f32 %v45
  %vm63 = vweird.f32 %v56
  %vm64 = vmor %vm62, %vm63
  %v65 = vsel %vm64, %v56, %v61
  %v66 = vmul.f32 %v32, %v55
  %v67 = vmul.f32 %v33, %v65
  %v68 = vld [vmem:[%s1] sm:$0x1]
  %v70 = vperm.slane %v68, 0
  %v72 = vmul.f32 %v66, %v70
  %v73 = vmul.f32 %v67, %v70
  %v74 = vld [vmem:[%s2] sm:$0x1]
  %v76 = vperm.slane %v74, 0
  %v78 = vadd.f32 %v72, %v76
  %v79 = vadd.f32 %v73, %v76
  %80 = vst.msk [vmem:[%s3] sm:$0xff] %vm16, %v78
  %81 = vst.msk [vmem:[%s3 + $0x8] sm:$0xff] %vm16, %v79
  // Predicated region
  $region14: #{melbert_forward.31} parent=0 // pred_check
    _
  $region15: #{melbert_forward.31} parent=0 // pred_check_branch
    %83 = sbr.rel (0) target = $region17
  $region16: #{melbert_forward.31} parent=0 // pred_region
    _
  $region17: #{melbert_forward.31} parent=0 // pred_fallthru
    _
  // Predicated region
  $region18: #{melbert_forward.31} parent=0 // pred_check
    _
  $region19: #{melbert_forward.31} parent=0 // pred_check_branch
    %85 = sbr.rel (0) target = $region21
  $region20: #{melbert_forward.31} parent=0 // pred_region
    _
  $region21: #{melbert_forward.31} parent=0 // pred_fallthru
    _

// kernel: melbert_forward.22
$region0: #{melbert_forward.22}
  #allocation0 [shape = 'u32[]', space=smem, size = 0x4, offset = 0x4, fixed_abs, tag = 'smem constant byte address 0x4 - core index']
  #allocation1 [shape = 'u32[72,128]{1,0:T(1,128)}', space=vmem, size = 0x9000, scoped, tag = 'internal scratch']
  %s0 = inlined_call_operand.vmem [shape: f32[16,32], index: 0, kind: input, shape index: {}]
  %s1 = inlined_call_operand.vmem [shape: bf16[32,96], index: 1, kind: input, shape index: {}]
  %s2 = inlined_call_operand.vmem [shape: f32[1,96], index: 2, kind: input, shape index: {}]
  %s3 = inlined_call_operand.vmem [shape: bf16[16,96], index: 3, kind: output, shape index: {}]
  %s4 = sld [smem:[#allocation0]]
  $region22: #{melbert_forward.22} parent=0
    _
  %s6 = ssub.s32 1, %s4
  %s7 = scalar_select 0, %s6, %s4
  // Predicated region
  $region2: #{melbert_forward.22} parent=0 // pred_check
    _
  $region3: #{melbert_forward.22} parent=0 // pred_check_branch
    %9 = sbr.rel (0) target = $region5
  $region4: #{melbert_forward.22} parent=0 // pred_region
    _
  $region5: #{melbert_forward.22} parent=0 // pred_fallthru
    _
  // Predicated region
  $region6: #{melbert_forward.22} parent=0 // pred_check
    _
  $region7: #{melbert_forward.22} parent=0 // pred_check_branch
    %11 = sbr.rel (0) target = $region9
  $region8: #{melbert_forward.22} parent=0 // pred_region
    _
  $region9: #{melbert_forward.22} parent=0 // pred_fallthru
    _
  // Predicated region
  $region10: #{melbert_forward.22} parent=0 // pred_check
    _
  $region11: #{melbert_forward.22} parent=0 // pred_check_branch
    %13 = sbr.rel (0) target = $region13
  $region12: #{melbert_forward.22} parent=0 // pred_region
    _
  $region13: #{melbert_forward.22} parent=0 // pred_fallthru
    _
  %v15 = vld [vmem:[%s0] sm:$0xff]
  %v16 = vld [vmem:[%s0 + $0x8] sm:$0xff]
  %v17 = vpack.c.bf16 %v16, %v15
  %v18 = vld [vmem:[%s1] sm:$0xf]
  %v19 = vld [vmem:[%s1 + $0x4] sm:$0xf]
  %v20 = vld [vmem:[%s1 + $0x8] sm:$0xf]
  %v21 = vld [vmem:[%s1 + $0xc] sm:$0xf]
  %v22 = vld [vmem:[%s2] sm:$0x1]
  %v24 = vperm.slane %v22, 0
  %v30 = vunpack.c.l.b16 %v18
  %v31 = vunpack.c.l.b16 %v19
  %v32 = vunpack.c.l.b16 %v20
  %v33 = vunpack.c.l.b16 %v21
  %v34 = vpack.c.b16 %v31, %v30
  %v35 = vpack.c.b16 %v33, %v32
  %vm38 = vcmask 261120
  %v40 = vsel %vm38, %v17, 0
  %42 = vmatpush.bf16.msra.mxu0 0
  %43 = vmatpush.bf16.msra.mxu0 0
  %44 = vmatpush.bf16.msra.mxu0 0
  %45 = vmatpush.bf16.msra.mxu0 0
  %46 = vmatpush.bf16.msra.mxu0 0
  %47 = vmatpush.bf16.msra.mxu0 0
  %48 = vmatpush.bf16.msra.mxu0 %v35
  %49 = vmatpush.bf16.msra.mxu0 %v34
  %50 = vmatmul.bf16.gmra.mxu0 %v40
  %v51 = vpop.f32.mrf.mxu0
  %v52 = vadd.f32 %v24, %v51
  %v53 = vpop.f32.mrf.mxu0
  %v54 = vadd.f32 %v24, %v53
  %55 = vdwg.mxu0
  %v56 = vpack.c.bf16 %v52, %v52
  %v57 = vpack.c.bf16 %v54, %v54
  %vm58 = vcmask 781312
  %59 = vst.msk [vmem:[%s3] sm:$0xf] %vm58, %v56
  %60 = vst.msk [vmem:[%s3 + $0x4] sm:$0xf] %vm58, %v57
  // Predicated region
  $region14: #{melbert_forward.22} parent=0 // pred_check
    _
  $region15: #{melbert_forward.22} parent=0 // pred_check_branch
    %62 = sbr.rel (0) target = $region17
  $region16: #{melbert_forward.22} parent=0 // pred_region
    _
  $region17: #{melbert_forward.22} parent=0 // pred_fallthru
    _
  // Predicated region
  $region18: #{melbert_forward.22} parent=0 // pred_check
    _
  $region19: #{melbert_forward.22} parent=0 // pred_check_branch
    %64 = sbr.rel (0) target = $region21
  $region20: #{melbert_forward.22} parent=0 // pred_region
    _
  $region21: #{melbert_forward.22} parent=0 // pred_fallthru
    _

// kernel: melbert_forward.24
$region0: #{melbert_forward.24}
  #allocation0 [shape = 'u32[]', space=smem, size = 0x4, offset = 0x4, fixed_abs, tag = 'smem constant byte address 0x4 - core index']
  #allocation1 [shape = 'u32[72,128]{1,0:T(1,128)}', space=vmem, size = 0x9000, scoped, tag = 'internal scratch']
  %s0 = inlined_call_operand.vmem [shape: bf16[16,32], index: 0, kind: input, shape index: {}]
  %s1 = inlined_call_operand.vmem [shape: bf16[32,32], index: 1, kind: input, shape index: {}]
  %s2 = inlined_call_operand.vmem [shape: f32[1,32], index: 2, kind: input, shape index: {}]
  %s3 = inlined_call_operand.vmem [shape: f32[16,32], index: 3, kind: input, shape index: {}]
  %s4 = inlined_call_operand.vmem [shape: f32[1,32], index: 4, kind: input, shape index: {}]
  %s5 = inlined_call_operand.vmem [shape: f32[1,32], index: 5, kind: input, shape index: {}]
  %s6 = inlined_call_operand.vmem [shape: f32[16,32], index: 6, kind: output, shape index: {}]
  %s7 = sld [smem:[#allocation0]]
  $region34: #{melbert_forward.24} parent=0
    _
  %s9 = ssub.s32 1, %s7
  %s10 = scalar_select 0, %s9, %s7
  // Predicated region
  $region2: #{melbert_forward.24} parent=0 // pred_check
    _
  $region3: #{melbert_forward.24} parent=0 // pred_check_branch
    %12 = sbr.rel (0) target = $region5
  $region4: #{melbert_forward.24} parent=0 // pred_region
    _
  $region5: #{melbert_forward.24} parent=0 // pred_fallthru
    _
  // Predicated region
  $region6: #{melbert_forward.24} parent=0 // pred_check
    _
  $region7: #{melbert_forward.24} parent=0 // pred_check_branch
    %14 = sbr.rel (0) target = $region9
  $region8: #{melbert_forward.24} parent=0 // pred_region
    _
  $region9: #{melbert_forward.24} parent=0 // pred_fallthru
    _
  // Predicated region
  $region10: #{melbert_forward.24} parent=0 // pred_check
    _
  $region11: #{melbert_forward.24} parent=0 // pred_check_branch
    %16 = sbr.rel (0) target = $region13
  $region12: #{melbert_forward.24} parent=0 // pred_region
    _
  $region13: #{melbert_forward.24} parent=0 // pred_fallthru
    _
  // Predicated region
  $region14: #{melbert_forward.24} parent=0 // pred_check
    _
  $region15: #{melbert_forward.24} parent=0 // pred_check_branch
    %18 = sbr.rel (0) target = $region17
  $region16: #{melbert_forward.24} parent=0 // pred_region
    _
  $region17: #{melbert_forward.24} parent=0 // pred_fallthru
    _
  // Predicated region
  $region18: #{melbert_forward.24} parent=0 // pred_check
    _
  $region19: #{melbert_forward.24} parent=0 // pred_check_branch
    %20 = sbr.rel (0) target = $region21
  $region20: #{melbert_forward.24} parent=0 // pred_region
    _
  $region21: #{melbert_forward.24} parent=0 // pred_fallthru
    _
  // Predicated region
  $region22: #{melbert_forward.24} parent=0 // pred_check
    _
  $region23: #{melbert_forward.24} parent=0 // pred_check_branch
    %22 = sbr.rel (0) target = $region25
  $region24: #{melbert_forward.24} parent=0 // pred_region
    _
  $region25: #{melbert_forward.24} parent=0 // pred_fallthru
    _
  %v24 = vld [vmem:[%s0] sm:$0xf]
  %v25 = vld [vmem:[%s0 + $0x4] sm:$0xf]
  %v26 = vld [vmem:[%s1] sm:$0xf]
  %v27 = vld [vmem:[%s1 + $0x4] sm:$0xf]
  %v28 = vld [vmem:[%s1 + $0x8] sm:$0xf]
  %v29 = vld [vmem:[%s1 + $0xc] sm:$0xf]
  %v30 = vld [vmem:[%s2] sm:$0x1]
  %v32 = vperm.slane %v30, 0
  %v36 = vunpack.c.l.b16 %v24
  %v37 = vunpack.c.l.b16 %v25
  %v38 = vpack.c.b16 %v37, %v36
  %v43 = vunpack.c.l.b16 %v26
  %v44 = vunpack.c.l.b16 %v27
  %v45 = vunpack.c.l.b16 %v28
  %v46 = vunpack.c.l.b16 %v29
  %v47 = vpack.c.b16 %v44, %v43
  %v48 = vpack.c.b16 %v46, %v45
  %vm51 = vcmask 261120
  %v53 = vsel %vm51, %v38, 0
  %55 = vmatpush.bf16.msra.mxu0 0
  %56 = vmatpush.bf16.msra.mxu0 0
  %57 = vmatpush.bf16.msra.mxu0 0
  %58 = vmatpush.bf16.msra.mxu0 0
  %59 = vmatpush.bf16.msra.mxu0 0
  %60 = vmatpush.bf16.msra.mxu0 0
  %61 = vmatpush.bf16.msra.mxu0 %v48
  %62 = vmatpush.bf16.msra.mxu0 %v47
  %63 = vmatmul.bf16.gmra.mxu0 %v53
  %v64 = vpop.f32.mrf.mxu0
  %v65 = vadd.f32 %v32, %v64
  %v66 = vpop.f32.mrf.mxu0
  %v67 = vadd.f32 %v32, %v66
  %68 = vdwg.mxu0
  %v69 = vld [vmem:[%s3] sm:$0xff]
  %v70 = vld [vmem:[%s3 + $0x8] sm:$0xff]
  %v71 = vadd.f32 %v65, %v69
  %v72 = vadd.f32 %v67, %v70
  %v73 = vsel %vm51, %v71, 0.0
  %74 = vadd.xlane.f32.xlu0 %v73
  %v75 = vpop.xlane.xlu0 %74
  %v76 = vsel %vm51, %v72, 0.0
  %77 = vadd.xlane.f32.xlu0 %v76
  %v78 = vpop.xlane.xlu0 %77
  %v79 = vrcp.pop 32.0
  %v80 = vmul.f32 32.0, %v79
  %v81 = vsub.f32 1.0, %v80
  %v82 = vmul.f32 %v79, %v81
  %v83 = vadd.f32 %v79, %v82
  %vm84 = vweird.f32 %v79
  %v85 = vsel %vm84, %v79, %v83
  %v86 = vmul.f32 %v75, %v85
  %v87 = vmul.f32 %v78, %v85
  %v88 = vsub.f32 %v71, %v86
  %v89 = vsub.f32 %v72, %v87
  %v90 = vmul.f32 %v88, %v88
  %v91 = vmul.f32 %v89, %v89
  %v92 = vsel %vm51, %v90, 0.0
  %93 = vadd.xlane.f32.xlu0 %v92
  %v94 = vpop.xlane.xlu0 %93
  %v95 = vsel %vm51, %v91, 0.0
  %96 = vadd.xlane.f32.xlu0 %v95
  %v97 = vpop.xlane.xlu0 %96
  %v98 = vmul.f32 %v94, %v85
  %v99 = vmul.f32 %v97, %v85
  %v100 = vadd.f32 %v98, 1e-12
  %v101 = vadd.f32 %v99, 1e-12
  %v102 = vrsqrt.pop %v100
  %v103 = vmul.f32 %v102, %v100
  %v104 = vmul.f32 %v103, %v102
  %v105 = vmul.f32 0.5, %v104
  %v106 = vsub.f32 1.5, %v105
  %v107 = vmul.f32 %v102, %v106
  %vm108 = vweird.f32 %v100
  %vm109 = vweird.f32 %v102
  %vm110 = vmor %vm108, %vm109
  %v111 = vsel %vm110, %v102, %v107
  %v112 = vrsqrt.pop %v101
  %v113 = vmul.f32 %v112, %v101
  %v114 = vmul.f32 %v113, %v112
  %v115 = vmul.f32 0.5, %v114
  %v116 = vsub.f32 1.5, %v115
  %v117 = vmul.f32 %v112, %v116
  %vm118 = vweird.f32 %v101
  %vm119 = vweird.f32 %v112
  %vm120 = vmor %vm118, %vm119
  %v121 = vsel %vm120, %v112, %v117
  %v122 = vmul.f32 %v88, %v111
  %v123 = vmul.f32 %v89, %v121
  %v124 = vld [vmem:[%s4] sm:$0x1]
  %v126 = vperm.slane %v124, 0
  %v128 = vmul.f32 %v122, %v126
  %v129 = vmul.f32 %v123, %v126
  %v130 = vld [vmem:[%s5] sm:$0x1]
  %v132 = vperm.slane %v130, 0
  %v134 = vadd.f32 %v128, %v132
  %v135 = vadd.f32 %v129, %v132
  %136 = vst.msk [vmem:[%s6] sm:$0xff] %vm51, %v134
  %137 = vst.msk [vmem:[%s6 + $0x8] sm:$0xff] %vm51, %v135
  // Predicated region
  $region26: #{melbert_forward.24} parent=0 // pred_check
    _
  $region27: #{melbert_forward.24} parent=0 // pred_check_branch
    %139 = sbr.rel (0) target = $region29
  $region28: #{melbert_forward.24} parent=0 // pred_region
    _
  $region29: #{melbert_forward.24} parent=0 // pred_fallthru
    _
  // Predicated region
  $region30: #{melbert_forward.24} parent=0 // pred_check
    _
  $region31: #{melbert_forward.24} parent=0 // pred_check_branch
    %141 = sbr.rel (0) target = $region33
  $region32: #{melbert_forward.24} parent=0 // pred_region
    _
  $region33: #{melbert_forward.24} parent=0 // pred_fallthru
    _

// kernel: melbert_forward.30
$region0: #{melbert_forward.30}
  #allocation0 [shape = 'u32[]', space=smem, size = 0x4, offset = 0x4, fixed_abs, tag = 'smem constant byte address 0x4 - core index']
  #allocation1 [shape = 'u32[72,128]{1,0:T(1,128)}', space=vmem, size = 0x9000, scoped, tag = 'internal scratch']
  %s0 = inlined_call_operand.vmem [shape: f32[2,32], index: 0, kind: input, shape index: {}]
  %s1 = inlined_call_operand.vmem [shape: bf16[32,32], index: 1, kind: input, shape index: {}]
  %s2 = inlined_call_operand.vmem [shape: f32[1,32], index: 2, kind: input, shape index: {}]
  %s3 = inlined_call_operand.vmem [shape: f32[2,32], index: 3, kind: output, shape index: {}]
  %s4 = sld [smem:[#allocation0]]
  $region22: #{melbert_forward.30} parent=0
    _
  %s6 = ssub.s32 1, %s4
  %s7 = scalar_select 0, %s6, %s4
  // Predicated region
  $region2: #{melbert_forward.30} parent=0 // pred_check
    _
  $region3: #{melbert_forward.30} parent=0 // pred_check_branch
    %9 = sbr.rel (0) target = $region5
  $region4: #{melbert_forward.30} parent=0 // pred_region
    _
  $region5: #{melbert_forward.30} parent=0 // pred_fallthru
    _
  // Predicated region
  $region6: #{melbert_forward.30} parent=0 // pred_check
    _
  $region7: #{melbert_forward.30} parent=0 // pred_check_branch
    %11 = sbr.rel (0) target = $region9
  $region8: #{melbert_forward.30} parent=0 // pred_region
    _
  $region9: #{melbert_forward.30} parent=0 // pred_fallthru
    _
  // Predicated region
  $region10: #{melbert_forward.30} parent=0 // pred_check
    _
  $region11: #{melbert_forward.30} parent=0 // pred_check_branch
    %13 = sbr.rel (0) target = $region13
  $region12: #{melbert_forward.30} parent=0 // pred_region
    _
  $region13: #{melbert_forward.30} parent=0 // pred_fallthru
    _
  %v15 = vld [vmem:[%s0] sm:$0x3]
  %v16 = vpack.c.bf16 %v15, %v15
  %v17 = vld [vmem:[%s1] sm:$0xf]
  %v18 = vld [vmem:[%s1 + $0x4] sm:$0xf]
  %v19 = vld [vmem:[%s1 + $0x8] sm:$0xf]
  %v20 = vld [vmem:[%s1 + $0xc] sm:$0xf]
  %v21 = vld [vmem:[%s2] sm:$0x1]
  %v23 = vperm.slane %v21, 0
  %v29 = vunpack.c.l.b16 %v17
  %v30 = vunpack.c.l.b16 %v18
  %v31 = vunpack.c.l.b16 %v19
  %v32 = vunpack.c.l.b16 %v20
  %v33 = vpack.c.b16 %v30, %v29
  %v34 = vpack.c.b16 %v32, %v31
  %vm37 = vcmask 261120
  %v39 = vsel %vm37, %v16, 0
  %41 = vmatpush.bf16.msra.mxu0 0
  %42 = vmatpush.bf16.msra.mxu0 0
  %43 = vmatpush.bf16.msra.mxu0 0
  %44 = vmatpush.bf16.msra.mxu0 0
  %45 = vmatpush.bf16.msra.mxu0 0
  %46 = vmatpush.bf16.msra.mxu0 0
  %47 = vmatpush.bf16.msra.mxu0 %v34
  %48 = vmatpush.bf16.msra.mxu0 %v33
  %49 = vmatmul.bf16.gmra.mxu0 %v39
  %v50 = vpop.f32.mrf.mxu0
  %v51 = vadd.f32 %v23, %v50
  %v52 = vpop.f32.mrf.mxu0
  %53 = vdwg.mxu0
  %v54 = vtanh.pop %v51
  %vm55 = vcmask 254976
  %56 = vst.msk [vmem:[%s3] sm:$0x3] %vm55, %v54
  // Predicated region
  $region14: #{melbert_forward.30} parent=0 // pred_check
    _
  $region15: #{melbert_forward.30} parent=0 // pred_check_branch
    %58 = sbr.rel (0) target = $region17
  $region16: #{melbert_forward.30} parent=0 // pred_region
    _
  $region17: #{melbert_forward.30} parent=0 // pred_fallthru
    _
  // Predicated region
  $region18: #{melbert_forward.30} parent=0 // pred_check
    _
  $region19: #{melbert_forward.30} parent=0 // pred_check_branch
    %60 = sbr.rel (0) target = $region21
  $region20: #{melbert_forward.30} parent=0 // pred_region
    _
  $region21: #{melbert_forward.30} parent=0 // pred_fallthru
    _

// kernel: melbert_forward.25
$region0: #{melbert_forward.25}
  #allocation0 [shape = 'u32[]', space=smem, size = 0x4, offset = 0x4, fixed_abs, tag = 'smem constant byte address 0x4 - core index']
  #allocation1 [shape = 'u32[72,128]{1,0:T(1,128)}', space=vmem, size = 0x9000, scoped, tag = 'internal scratch']
  %s0 = inlined_call_operand.vmem [shape: f32[16,32], index: 0, kind: input, shape index: {}, may-alias: {0,5}]
  %s1 = inlined_call_operand.vmem [shape: bf16[32,64], index: 1, kind: input, shape index: {}]
  %s2 = inlined_call_operand.vmem [shape: f32[1,64], index: 2, kind: input, shape index: {}]
  %s3 = inlined_call_operand.vmem [shape: bf16[64,32], index: 3, kind: input, shape index: {}]
  %s4 = inlined_call_operand.vmem [shape: f32[1,32], index: 4, kind: input, shape index: {}]
  %s5 = inlined_call_operand.vmem [shape: f32[16,32], index: 5, kind: input, shape index: {}, may-alias: {0,5}]
  %s6 = inlined_call_operand.vmem [shape: f32[1,32], index: 6, kind: input, shape index: {}]
  %s7 = inlined_call_operand.vmem [shape: f32[1,32], index: 7, kind: input, shape index: {}]
  %s8 = inlined_call_operand.vmem [shape: f32[16,32], index: 8, kind: output, shape index: {}]
  %s9 = sld [smem:[#allocation0]]
  $region50: #{melbert_forward.25} parent=0
    _
  %s11 = ssub.s32 1, %s9
  %s12 = scalar_select 0, %s11, %s9
  // Predicated region
  $region2: #{melbert_forward.25} parent=0 // pred_check
    _
  $region3: #{melbert_forward.25} parent=0 // pred_check_branch
    %14 = sbr.rel (0) target = $region5
  $region4: #{melbert_forward.25} parent=0 // pred_region
    _
  $region5: #{melbert_forward.25} parent=0 // pred_fallthru
    _
  // Predicated region
  $region6: #{melbert_forward.25} parent=0 // pred_check
    _
  $region7: #{melbert_forward.25} parent=0 // pred_check_branch
    %16 = sbr.rel (0) target = $region9
  $region8: #{melbert_forward.25} parent=0 // pred_region
    _
  $region9: #{melbert_forward.25} parent=0 // pred_fallthru
    _
  // Predicated region
  $region10: #{melbert_forward.25} parent=0 // pred_check
    _
  $region11: #{melbert_forward.25} parent=0 // pred_check_branch
    %18 = sbr.rel (0) target = $region13
  $region12: #{melbert_forward.25} parent=0 // pred_region
    _
  $region13: #{melbert_forward.25} parent=0 // pred_fallthru
    _
  // Predicated region
  $region14: #{melbert_forward.25} parent=0 // pred_check
    _
  $region15: #{melbert_forward.25} parent=0 // pred_check_branch
    %20 = sbr.rel (0) target = $region17
  $region16: #{melbert_forward.25} parent=0 // pred_region
    _
  $region17: #{melbert_forward.25} parent=0 // pred_fallthru
    _
  // Predicated region
  $region18: #{melbert_forward.25} parent=0 // pred_check
    _
  $region19: #{melbert_forward.25} parent=0 // pred_check_branch
    %22 = sbr.rel (0) target = $region21
  $region20: #{melbert_forward.25} parent=0 // pred_region
    _
  $region21: #{melbert_forward.25} parent=0 // pred_fallthru
    _
  // Predicated region
  $region22: #{melbert_forward.25} parent=0 // pred_check
    _
  $region23: #{melbert_forward.25} parent=0 // pred_check_branch
    %24 = sbr.rel (0) target = $region25
  $region24: #{melbert_forward.25} parent=0 // pred_region
    _
  $region25: #{melbert_forward.25} parent=0 // pred_fallthru
    _
  // Predicated region
  $region26: #{melbert_forward.25} parent=0 // pred_check
    _
  $region27: #{melbert_forward.25} parent=0 // pred_check_branch
    %26 = sbr.rel (0) target = $region29
  $region28: #{melbert_forward.25} parent=0 // pred_region
    _
  $region29: #{melbert_forward.25} parent=0 // pred_fallthru
    _
  // Predicated region
  $region30: #{melbert_forward.25} parent=0 // pred_check
    _
  $region31: #{melbert_forward.25} parent=0 // pred_check_branch
    %28 = sbr.rel (0) target = $region33
  $region32: #{melbert_forward.25} parent=0 // pred_region
    _
  $region33: #{melbert_forward.25} parent=0 // pred_fallthru
    _
  %p30 = scmp.eq.s32.totalorder 0, 0
  // Predicated region
  $region34: #{melbert_forward.25} parent=0 // pred_check
    %p31 = pneg %p30
  $region35: #{melbert_forward.25} parent=0 // pred_check_branch
    %33 = sbr.rel (%p31) target = $region37
  $region36: #{melbert_forward.25} parent=0 // pred_region
    %vm34 = vcmask 261120
    %35 = vst.msk [vmem:[%s8] sm:$0xff] %vm34, 0.0
    %36 = vst.msk [vmem:[%s8 + $0x8] sm:$0xff] %vm34, 0.0
  $region37: #{melbert_forward.25} parent=0 // pred_fallthru
    _
  %v37 = vld [vmem:[%s0] sm:$0xff]
  %v38 = vld [vmem:[%s0 + $0x8] sm:$0xff]
  %v39 = vpack.c.bf16 %v38, %v37
  %v40 = vld [vmem:[%s1] sm:$0xf]
  %v41 = vld [vmem:[%s1 + $0x4] sm:$0xf]
  %v42 = vld [vmem:[%s1 + $0x8] sm:$0xf]
  %v43 = vld [vmem:[%s1 + $0xc] sm:$0xf]
  %v44 = vld [vmem:[%s2] sm:$0x1]
  %v46 = vperm.slane %v44, 0
  %v52 = vunpack.c.l.b16 %v40
  %v53 = vunpack.c.l.b16 %v41
  %v54 = vunpack.c.l.b16 %v42
  %v55 = vunpack.c.l.b16 %v43
  %v56 = vpack.c.b16 %v53, %v52
  %v57 = vpack.c.b16 %v55, %v54
  %vm60 = vcmask 261120
  %v62 = vsel %vm60, %v39, 0
  %64 = vmatpush.bf16.msra.mxu0 0
  %65 = vmatpush.bf16.msra.mxu0 0
  %66 = vmatpush.bf16.msra.mxu0 0
  %67 = vmatpush.bf16.msra.mxu0 0
  %68 = vmatpush.bf16.msra.mxu0 0
  %69 = vmatpush.bf16.msra.mxu0 0
  %70 = vmatpush.bf16.msra.mxu0 %v57
  %71 = vmatpush.bf16.msra.mxu0 %v56
  %72 = vmatmul.bf16.gmra.mxu0 %v62
  %v73 = vpop.f32.mrf.mxu0
  %v74 = vadd.f32 %v46, %v73
  %v75 = vpop.f32.mrf.mxu0
  %v76 = vadd.f32 %v46, %v75
  %77 = vdwg.mxu0
  %v78 = vmul.f32 %v74, 0.5
  %v79 = vmul.f32 %v76, 0.5
  %v80 = vmul.f32 %v74, 0.044715
  %v81 = vmul.f32 %v76, 0.044715
  %v82 = vmul.f32 %v80, %v74
  %v83 = vmul.f32 %v81, %v76
  %v84 = vmul.f32 %v82, %v74
  %v85 = vmul.f32 %v83, %v76
  %v86 = vadd.f32 %v74, %v84
  %v87 = vadd.f32 %v76, %v85
  %v88 = vmul.f32 %v86, 0.7978846
  %v89 = vmul.f32 %v87, 0.7978846
  %v90 = vtanh.pop %v88
  %v91 = vtanh.pop %v89
  %v92 = vadd.f32 %v90, 1.0
  %v93 = vadd.f32 %v91, 1.0
  %v94 = vmul.f32 %v78, %v92
  %v95 = vmul.f32 %v79, %v93
  %v96 = vld [vmem:[%s8] sm:$0xff]
  %v97 = vld [vmem:[%s8 + $0x8] sm:$0xff]
  %v98 = vpack.c.bf16 %v95, %v94
  %v99 = vld [vmem:[%s3] sm:$0xf]
  %v100 = vld [vmem:[%s3 + $0x4] sm:$0xf]
  %v101 = vld [vmem:[%s3 + $0x8] sm:$0xf]
  %v102 = vld [vmem:[%s3 + $0xc] sm:$0xf]
  %v103 = vld [vmem:[%s3 + $0x10] sm:$0xf]
  %v104 = vld [vmem:[%s3 + $0x14] sm:$0xf]
  %v105 = vld [vmem:[%s3 + $0x18] sm:$0xf]
  %v106 = vld [vmem:[%s3 + $0x1c] sm:$0xf]
  %v115 = vunpack.c.l.b16 %v99
  %v116 = vunpack.c.l.b16 %v100
  %v117 = vunpack.c.l.b16 %v101
  %v118 = vunpack.c.l.b16 %v102
  %v119 = vunpack.c.l.b16 %v103
  %v120 = vunpack.c.l.b16 %v104
  %v121 = vunpack.c.l.b16 %v105
  %v122 = vunpack.c.l.b16 %v106
  %v123 = vpack.c.b16 %v116, %v115
  %v124 = vpack.c.b16 %v118, %v117
  %v125 = vpack.c.b16 %v120, %v119
  %v126 = vpack.c.b16 %v122, %v121
  %vm131 = vcmask 523264
  %v133 = vsel %vm131, %v98, 0
  %135 = vmatpush.bf16.msra.mxu0 0
  %136 = vmatpush.bf16.msra.mxu0 0
  %137 = vmatpush.bf16.msra.mxu0 0
  %138 = vmatpush.bf16.msra.mxu0 0
  %139 = vmatpush.bf16.msra.mxu0 %v126
  %140 = vmatpush.bf16.msra.mxu0 %v125
  %141 = vmatpush.bf16.msra.mxu0 %v124
  %142 = vmatpush.bf16.msra.mxu0 %v123
  %143 = vmatmul.bf16.gmra.mxu0 %v133
  %v144 = vpop.f32.mrf.mxu0
  %v145 = vadd.f32 0.0, %v144
  %v146 = vpop.f32.mrf.mxu0
  %v147 = vadd.f32 0.0, %v146
  %148 = vdwg.mxu0
  %v149 = vadd.f32 %v96, %v145
  %v150 = vadd.f32 %v97, %v147
  %151 = vst.msk [vmem:[%s8] sm:$0xff] %vm60, %v149
  %152 = vst.msk [vmem:[%s8 + $0x8] sm:$0xff] %vm60, %v150
  // Predicated region
  $region38: #{melbert_forward.25} parent=0 // pred_check
    %p153 = pneg %p30
  $region39: #{melbert_forward.25} parent=0 // pred_check_branch
    %155 = sbr.rel (%p153) target = $region41
  $region40: #{melbert_forward.25} parent=0 // pred_region
    %v156 = vld [vmem:[%s8] sm:$0xff]
    %v157 = vld [vmem:[%s8 + $0x8] sm:$0xff]
    %v158 = vld [vmem:[%s4] sm:$0x1]
    %v160 = vperm.slane %v158, 0
    %v162 = vadd.f32 %v156, %v160
    %v163 = vadd.f32 %v157, %v160
    %v164 = vld [vmem:[%s5] sm:$0xff]
    %v165 = vld [vmem:[%s5 + $0x8] sm:$0xff]
    %v166 = vadd.f32 %v162, %v164
    %v167 = vadd.f32 %v163, %v165
    %v168 = vsel %vm60, %v166, 0.0
    %169 = vadd.xlane.f32.xlu0 %v168
    %v170 = vpop.xlane.xlu0 %169
    %v171 = vsel %vm60, %v167, 0.0
    %172 = vadd.xlane.f32.xlu0 %v171
    %v173 = vpop.xlane.xlu0 %172
    %v174 = vrcp.pop 32.0
    %v175 = vmul.f32 32.0, %v174
    %v176 = vsub.f32 1.0, %v175
    %v177 = vmul.f32 %v174, %v176
    %v178 = vadd.f32 %v174, %v177
    %vm179 = vweird.f32 %v174
    %v180 = vsel %vm179, %v174, %v178
    %v181 = vmul.f32 %v170, %v180
    %v182 = vmul.f32 %v173, %v180
    %v183 = vsub.f32 %v166, %v181
    %v184 = vsub.f32 %v167, %v182
    %v185 = vmul.f32 %v183, %v183
    %v186 = vmul.f32 %v184, %v184
    %v187 = vsel %vm60, %v185, 0.0
    %188 = vadd.xlane.f32.xlu0 %v187
    %v189 = vpop.xlane.xlu0 %188
    %v190 = vsel %vm60, %v186, 0.0
    %191 = vadd.xlane.f32.xlu0 %v190
    %v192 = vpop.xlane.xlu0 %191
    %v193 = vmul.f32 %v189, %v180
    %v194 = vmul.f32 %v192, %v180
    %v195 = vadd.f32 %v193, 1e-12
    %v196 = vadd.f32 %v194, 1e-12
    %v197 = vrsqrt.pop %v195
    %v198 = vmul.f32 %v197, %v195
    %v199 = vmul.f32 %v198, %v197
    %v200 = vmul.f32 0.5, %v199
    %v201 = vsub.f32 1.5, %v200
    %v202 = vmul.f32 %v197, %v201
    %vm203 = vweird.f32 %v195
    %vm204 = vweird.f32 %v197
    %vm205 = vmor %vm203, %vm204
    %v206 = vsel %vm205, %v197, %v202
    %v207 = vrsqrt.pop %v196
    %v208 = vmul.f32 %v207, %v196
    %v209 = vmul.f32 %v208, %v207
    %v210 = vmul.f32 0.5, %v209
    %v211 = vsub.f32 1.5, %v210
    %v212 = vmul.f32 %v207, %v211
    %vm213 = vweird.f32 %v196
    %vm214 = vweird.f32 %v207
    %vm215 = vmor %vm213, %vm214
    %v216 = vsel %vm215, %v207, %v212
    %v217 = vmul.f32 %v183, %v206
    %v218 = vmul.f32 %v184, %v216
    %v219 = vld [vmem:[%s6] sm:$0x1]
    %v221 = vperm.slane %v219, 0
    %v223 = vmul.f32 %v217, %v221
    %v224 = vmul.f32 %v218, %v221
    %v225 = vld [vmem:[%s7] sm:$0x1]
    %v227 = vperm.slane %v225, 0
    %v229 = vadd.f32 %v223, %v227
    %v230 = vadd.f32 %v224, %v227
    %231 = vst.msk [vmem:[%s8] sm:$0xff] %vm60, %v229
    %232 = vst.msk [vmem:[%s8 + $0x8] sm:$0xff] %vm60, %v230
  $region41: #{melbert_forward.25} parent=0 // pred_fallthru
    _
  // Predicated region
  $region42: #{melbert_forward.25} parent=0 // pred_check
    _
  $region43: #{melbert_forward.25} parent=0 // pred_check_branch
    %234 = sbr.rel (0) target = $region45
  $region44: #{melbert_forward.25} parent=0 // pred_region
    _
  $region45: #{melbert_forward.25} parent=0 // pred_fallthru
    _
  // Predicated region
  $region46: #{melbert_forward.25} parent=0 // pred_check
    _
  $region47: #{melbert_forward.25} parent=0 // pred_check_branch
    %236 = sbr.rel (0) target = $region49
  $region48: #{melbert_forward.25} parent=0 // pred_region
    _
  $region49: #{melbert_forward.25} parent=0 // pred_fallthru
    _

// kernel: melbert_forward.41
$region0: #{melbert_forward.41}
  #allocation0 [shape = 'u32[]', space=smem, size = 0x4, offset = 0x4, fixed_abs, tag = 'smem constant byte address 0x4 - core index']
  #allocation1 [shape = 'u32[72,128]{1,0:T(1,128)}', space=vmem, size = 0x9000, scoped, tag = 'internal scratch']
  %s0 = inlined_call_operand.vmem [shape: f32[2,32], index: 0, kind: input, shape index: {}]
  %s1 = inlined_call_operand.vmem [shape: f32[2,32], index: 1, kind: input, shape index: {}]
  %s2 = inlined_call_operand.vmem [shape: f32[2,32], index: 2, kind: input, shape index: {}]
  %s3 = inlined_call_operand.vmem [shape: f32[32,32], index: 3, kind: input, shape index: {}]
  %s4 = inlined_call_operand.vmem [shape: f32[32,32], index: 4, kind: input, shape index: {}]
  %s5 = inlined_call_operand.vmem [shape: f32[1,32], index: 5, kind: input, shape index: {}]
  %s6 = inlined_call_operand.vmem [shape: f32[32,32], index: 6, kind: input, shape index: {}]
  %s7 = inlined_call_operand.vmem [shape: f32[32,32], index: 7, kind: input, shape index: {}]
  %s8 = inlined_call_operand.vmem [shape: f32[1,32], index: 8, kind: input, shape index: {}]
  %s9 = inlined_call_operand.vmem [shape: f32[32,3], index: 9, kind: input, shape index: {}]
  %s10 = inlined_call_operand.vmem [shape: f32[32,3], index: 10, kind: input, shape index: {}]
  %s11 = inlined_call_operand.vmem [shape: f32[1,3], index: 11, kind: input, shape index: {}]
  %s12 = inlined_call_operand.hbm [shape: f32[2,3], index: 12, kind: output, shape index: {}]
  %s13 = sld [smem:[#allocation0]]
  $region58: #{melbert_forward.41} parent=0
    _
  %s15 = ssub.s32 1, %s13
  %s16 = scalar_select 0, %s15, %s13
  $region1: #{melbert_forward.41} parent=0
    #allocation2 [shape = 'u8[1024]{0}', space=vmem, size = 0x400, scoped, tag = 'output window, operand 0, single buffered']
    #allocation3 [shape = 's32[1]{0}', space=sflag, size = 0x4, scoped, tag = 'scoped memory for melbert_forward.41']
    %17 = vsyncpa [#allocation3], 0
    // Predicated region
    $region2: #{melbert_forward.41} parent=1 // pred_check
      _
    $region3: #{melbert_forward.41} parent=1 // pred_check_branch
      %19 = sbr.rel (0) target = $region5
    $region4: #{melbert_forward.41} parent=1 // pred_region
      _
    $region5: #{melbert_forward.41} parent=1 // pred_fallthru
      _
    // Predicated region
    $region6: #{melbert_forward.41} parent=1 // pred_check
      _
    $region7: #{melbert_forward.41} parent=1 // pred_check_branch
      %21 = sbr.rel (0) target = $region9
    $region8: #{melbert_forward.41} parent=1 // pred_region
      _
    $region9: #{melbert_forward.41} parent=1 // pred_fallthru
      _
    // Predicated region
    $region10: #{melbert_forward.41} parent=1 // pred_check
      _
    $region11: #{melbert_forward.41} parent=1 // pred_check_branch
      %23 = sbr.rel (0) target = $region13
    $region12: #{melbert_forward.41} parent=1 // pred_region
      _
    $region13: #{melbert_forward.41} parent=1 // pred_fallthru
      _
    // Predicated region
    $region14: #{melbert_forward.41} parent=1 // pred_check
      _
    $region15: #{melbert_forward.41} parent=1 // pred_check_branch
      %25 = sbr.rel (0) target = $region17
    $region16: #{melbert_forward.41} parent=1 // pred_region
      _
    $region17: #{melbert_forward.41} parent=1 // pred_fallthru
      _
    // Predicated region
    $region18: #{melbert_forward.41} parent=1 // pred_check
      _
    $region19: #{melbert_forward.41} parent=1 // pred_check_branch
      %27 = sbr.rel (0) target = $region21
    $region20: #{melbert_forward.41} parent=1 // pred_region
      _
    $region21: #{melbert_forward.41} parent=1 // pred_fallthru
      _
    // Predicated region
    $region22: #{melbert_forward.41} parent=1 // pred_check
      _
    $region23: #{melbert_forward.41} parent=1 // pred_check_branch
      %29 = sbr.rel (0) target = $region25
    $region24: #{melbert_forward.41} parent=1 // pred_region
      _
    $region25: #{melbert_forward.41} parent=1 // pred_fallthru
      _
    // Predicated region
    $region26: #{melbert_forward.41} parent=1 // pred_check
      _
    $region27: #{melbert_forward.41} parent=1 // pred_check_branch
      %31 = sbr.rel (0) target = $region29
    $region28: #{melbert_forward.41} parent=1 // pred_region
      _
    $region29: #{melbert_forward.41} parent=1 // pred_fallthru
      _
    // Predicated region
    $region30: #{melbert_forward.41} parent=1 // pred_check
      _
    $region31: #{melbert_forward.41} parent=1 // pred_check_branch
      %33 = sbr.rel (0) target = $region33
    $region32: #{melbert_forward.41} parent=1 // pred_region
      _
    $region33: #{melbert_forward.41} parent=1 // pred_fallthru
      _
    // Predicated region
    $region34: #{melbert_forward.41} parent=1 // pred_check
      _
    $region35: #{melbert_forward.41} parent=1 // pred_check_branch
      %35 = sbr.rel (0) target = $region37
    $region36: #{melbert_forward.41} parent=1 // pred_region
      _
    $region37: #{melbert_forward.41} parent=1 // pred_fallthru
      _
    // Predicated region
    $region38: #{melbert_forward.41} parent=1 // pred_check
      _
    $region39: #{melbert_forward.41} parent=1 // pred_check_branch
      %37 = sbr.rel (0) target = $region41
    $region40: #{melbert_forward.41} parent=1 // pred_region
      _
    $region41: #{melbert_forward.41} parent=1 // pred_fallthru
      _
    // Predicated region
    $region42: #{melbert_forward.41} parent=1 // pred_check
      _
    $region43: #{melbert_forward.41} parent=1 // pred_check_branch
      %39 = sbr.rel (0) target = $region45
    $region44: #{melbert_forward.41} parent=1 // pred_region
      _
    $region45: #{melbert_forward.41} parent=1 // pred_fallthru
      _
    // Predicated region
    $region46: #{melbert_forward.41} parent=1 // pred_check
      _
    $region47: #{melbert_forward.41} parent=1 // pred_check_branch
      %41 = sbr.rel (0) target = $region49
    $region48: #{melbert_forward.41} parent=1 // pred_region
      _
    $region49: #{melbert_forward.41} parent=1 // pred_fallthru
      _
    %v42 = vld [vmem:[%s0] sm:$0x3]
    %v43 = vld [vmem:[%s1] sm:$0x3]
    %v44 = vld [vmem:[%s2] sm:$0x3]
    %v45 = vld [vmem:[%s3] sm:$0xff]
    %v46 = vld [vmem:[%s3 + $0x8] sm:$0xff]
    %v47 = vld [vmem:[%s3 + $0x10] sm:$0xff]
    %v48 = vld [vmem:[%s3 + $0x18] sm:$0xff]
    %v49 = vld [vmem:[%s4] sm:$0xff]
    %v50 = vld [vmem:[%s4 + $0x8] sm:$0xff]
    %v51 = vld [vmem:[%s4 + $0x10] sm:$0xff]
    %v52 = vld [vmem:[%s4 + $0x18] sm:$0xff]
    %vm53 = vcmask 261120
    %v55 = vsel %vm53, %v43, 0
    %57 = vmatpush.msra.mxu0 0.0
    %58 = vmatpush.msra.mxu0 0.0
    %59 = vmatpush.msra.mxu0 0.0
    %60 = vmatpush.msra.mxu0 0.0
    %61 = vmatpush.msra.mxu0 0.0
    %62 = vmatpush.msra.mxu0 0.0
    %63 = vmatpush.msra.mxu0 0.0
    %64 = vmatpush.msra.mxu0 0.0
    %65 = vmatpush.msra.mxu0 0.0
    %66 = vmatpush.msra.mxu0 0.0
    %67 = vmatpush.msra.mxu0 0.0
    %68 = vmatpush.msra.mxu0 0.0
    %69 = vmatpush.msra.mxu0 %v52
    %70 = vmatpush.msra.mxu0 %v51
    %71 = vmatpush.msra.mxu0 %v50
    %72 = vmatpush.msra.mxu0 %v49
    %73 = vmatmul.f32.gmra.mxu0 %v55
    %v74 = vpop.f32.mrf.mxu0
    %v75 = vadd.f32 0.0, %v74
    %76 = vdwg.mxu0
    %v78 = vsel %vm53, %v42, 0
    %80 = vmatpush.msra.mxu0 0.0
    %81 = vmatpush.msra.mxu0 0.0
    %82 = vmatpush.msra.mxu0 0.0
    %83 = vmatpush.msra.mxu0 0.0
    %84 = vmatpush.msra.mxu0 0.0
    %85 = vmatpush.msra.mxu0 0.0
    %86 = vmatpush.msra.mxu0 0.0
    %87 = vmatpush.msra.mxu0 0.0
    %88 = vmatpush.msra.mxu0 0.0
    %89 = vmatpush.msra.mxu0 0.0
    %90 = vmatpush.msra.mxu0 0.0
    %91 = vmatpush.msra.mxu0 0.0
    %92 = vmatpush.msra.mxu0 %v48
    %93 = vmatpush.msra.mxu0 %v47
    %94 = vmatpush.msra.mxu0 %v46
    %95 = vmatpush.msra.mxu0 %v45
    %96 = vmatmul.f32.gmra.mxu0 %v78
    %v97 = vpop.f32.mrf.mxu0
    %v98 = vadd.f32 %v75, %v97
    %99 = vdwg.mxu0
    %v100 = vld [vmem:[%s5] sm:$0x1]
    %v102 = vperm.slane %v100, 0
    %v104 = vadd.f32 %v98, %v102
    %v105 = vld [vmem:[%s6] sm:$0xff]
    %v106 = vld [vmem:[%s6 + $0x8] sm:$0xff]
    %v107 = vld [vmem:[%s6 + $0x10] sm:$0xff]
    %v108 = vld [vmem:[%s6 + $0x18] sm:$0xff]
    %v109 = vld [vmem:[%s7] sm:$0xff]
    %v110 = vld [vmem:[%s7 + $0x8] sm:$0xff]
    %v111 = vld [vmem:[%s7 + $0x10] sm:$0xff]
    %v112 = vld [vmem:[%s7 + $0x18] sm:$0xff]
    %113 = vmatpush.msra.mxu0 0.0
    %114 = vmatpush.msra.mxu0 0.0
    %115 = vmatpush.msra.mxu0 0.0
    %116 = vmatpush.msra.mxu0 0.0
    %117 = vmatpush.msra.mxu0 0.0
    %118 = vmatpush.msra.mxu0 0.0
    %119 = vmatpush.msra.mxu0 0.0
    %120 = vmatpush.msra.mxu0 0.0
    %121 = vmatpush.msra.mxu0 0.0
    %122 = vmatpush.msra.mxu0 0.0
    %123 = vmatpush.msra.mxu0 0.0
    %124 = vmatpush.msra.mxu0 0.0
    %125 = vmatpush.msra.mxu0 %v112
    %126 = vmatpush.msra.mxu0 %v111
    %127 = vmatpush.msra.mxu0 %v110
    %128 = vmatpush.msra.mxu0 %v109
    %129 = vmatmul.f32.gmra.mxu0 %v55
    %v130 = vpop.f32.mrf.mxu0
    %v131 = vadd.f32 0.0, %v130
    %132 = vdwg.mxu0
    %v134 = vsel %vm53, %v44, 0
    %136 = vmatpush.msra.mxu0 0.0
    %137 = vmatpush.msra.mxu0 0.0
    %138 = vmatpush.msra.mxu0 0.0
    %139 = vmatpush.msra.mxu0 0.0
    %140 = vmatpush.msra.mxu0 0.0
    %141 = vmatpush.msra.mxu0 0.0
    %142 = vmatpush.msra.mxu0 0.0
    %143 = vmatpush.msra.mxu0 0.0
    %144 = vmatpush.msra.mxu0 0.0
    %145 = vmatpush.msra.mxu0 0.0
    %146 = vmatpush.msra.mxu0 0.0
    %147 = vmatpush.msra.mxu0 0.0
    %148 = vmatpush.msra.mxu0 %v108
    %149 = vmatpush.msra.mxu0 %v107
    %150 = vmatpush.msra.mxu0 %v106
    %151 = vmatpush.msra.mxu0 %v105
    %152 = vmatmul.f32.gmra.mxu0 %v134
    %v153 = vpop.f32.mrf.mxu0
    %v154 = vadd.f32 %v131, %v153
    %155 = vdwg.mxu0
    %v156 = vld [vmem:[%s8] sm:$0x1]
    %v158 = vperm.slane %v156, 0
    %v160 = vadd.f32 %v154, %v158
    %v161 = vld [vmem:[%s9] sm:$0xff]
    %v162 = vld [vmem:[%s9 + $0x8] sm:$0xff]
    %v163 = vld [vmem:[%s9 + $0x10] sm:$0xff]
    %v164 = vld [vmem:[%s9 + $0x18] sm:$0xff]
    %v165 = vld [vmem:[%s10] sm:$0xff]
    %v166 = vld [vmem:[%s10 + $0x8] sm:$0xff]
    %v167 = vld [vmem:[%s10 + $0x10] sm:$0xff]
    %v168 = vld [vmem:[%s10 + $0x18] sm:$0xff]
    %v170 = vsel %vm53, %v160, 0
    %172 = vmatpush.msra.mxu0 0.0
    %173 = vmatpush.msra.mxu0 0.0
    %174 = vmatpush.msra.mxu0 0.0
    %175 = vmatpush.msra.mxu0 0.0
    %176 = vmatpush.msra.mxu0 0.0
    %177 = vmatpush.msra.mxu0 0.0
    %178 = vmatpush.msra.mxu0 0.0
    %179 = vmatpush.msra.mxu0 0.0
    %180 = vmatpush.msra.mxu0 0.0
    %181 = vmatpush.msra.mxu0 0.0
    %182 = vmatpush.msra.mxu0 0.0
    %183 = vmatpush.msra.mxu0 0.0
    %184 = vmatpush.msra.mxu0 %v168
    %185 = vmatpush.msra.mxu0 %v167
    %186 = vmatpush.msra.mxu0 %v166
    %187 = vmatpush.msra.mxu0 %v165
    %188 = vmatmul.f32.gmra.mxu0 %v170
    %v189 = vpop.f32.mrf.mxu0
    %v190 = vadd.f32 0.0, %v189
    %191 = vdwg.mxu0
    %v193 = vsel %vm53, %v104, 0
    %195 = vmatpush.msra.mxu0 0.0
    %196 = vmatpush.msra.mxu0 0.0
    %197 = vmatpush.msra.mxu0 0.0
    %198 = vmatpush.msra.mxu0 0.0
    %199 = vmatpush.msra.mxu0 0.0
    %200 = vmatpush.msra.mxu0 0.0
    %201 = vmatpush.msra.mxu0 0.0
    %202 = vmatpush.msra.mxu0 0.0
    %203 = vmatpush.msra.mxu0 0.0
    %204 = vmatpush.msra.mxu0 0.0
    %205 = vmatpush.msra.mxu0 0.0
    %206 = vmatpush.msra.mxu0 0.0
    %207 = vmatpush.msra.mxu0 %v164
    %208 = vmatpush.msra.mxu0 %v163
    %209 = vmatpush.msra.mxu0 %v162
    %210 = vmatpush.msra.mxu0 %v161
    %211 = vmatmul.f32.gmra.mxu0 %v193
    %v212 = vpop.f32.mrf.mxu0
    %v213 = vadd.f32 %v190, %v212
    %214 = vdwg.mxu0
    %v215 = vld [vmem:[%s11] sm:$0x1]
    %v217 = vperm.slane %v215, 0
    %v219 = vadd.f32 %v213, %v217
    %vm220 = vcmask 17408
    %v221 = vsel %vm220, %v219, -inf
    %222 = vmax.xlane.f32.xlu0 %v221
    %v223 = vpop.xlane.xlu0 %222
    %v224 = vsub.f32 %v219, %v223
    %v225 = vmul.f32 %v224, 1.442695
    %v226 = vpow.pop %v225
    %v227 = vsel %vm220, %v226, 0.0
    %228 = vadd.xlane.f32.xlu0 %v227
    %v229 = vpop.xlane.xlu0 %228
    %v230 = vlog2.pop %v229
    %v231 = vmul.f32 %v230, 0.6931472
    %v232 = vsub.f32 %v224, %v231
    %233 = vst.msk [vmem:[#allocation2] sm:$0x3] %vm220, %v232
    // Predicated region
    $region50: #{melbert_forward.41} parent=1 // pred_check
      _
    $region51: #{melbert_forward.41} parent=1 // pred_check_branch
      %235 = sbr.rel (0) target = $region53
    $region52: #{melbert_forward.41} parent=1 // pred_region
      %237 = vsyncadd [#allocation3], 0
      %s239 = sshll.u32 [#allocation2], 4
      %s240 = int_to_ptr.vmem [resolvable:$true] %s239
      %s241 = sshll.u32 %s12, 4
      %s242 = int_to_ptr.hbm [resolvable:$true] %s241
      %244 = dma.vmem_to_hbm [thread:$0]  %s240, 32, %s242, [#allocation3]
    $region53: #{melbert_forward.41} parent=1 // pred_fallthru
      _
    // Predicated region
    $region54: #{melbert_forward.41} parent=1 // pred_check
      _
    $region55: #{melbert_forward.41} parent=1 // pred_check_branch
      %246 = sbr.rel (0) target = $region57
    $region56: #{melbert_forward.41} parent=1 // pred_region
      %248 = dma.done [#allocation3], 32
    $region57: #{melbert_forward.41} parent=1 // pred_fallthru
      _
    %249 = vsyncpa [#allocation3], 1

</llo_original>
